<compile_context>
chip_gen: v7x
topology: tpu7x:2x2x1
jax: 0.10.0
libtpu: 0.0.40
codegen_flags: <defaults>
</compile_context>

<pallas_src>
import jax
import jax.numpy as jnp
from jax.experimental import pallas as pl


# ----------------------------------------------------------------------------
# Problem definition (small deterministic example, consistent with the module).
# ----------------------------------------------------------------------------
NODE_TYPES = {"user": 16, "item": 24}          # insertion order = row packing
RELATIONS = [                                   # (src_type, rel_name, dst_type)
    ("user", "follows", "user"),
    ("user", "buys", "item"),
    ("item", "bought-by", "user"),
]
DIM_IN = 16
DIM_OUT = 32
NUM_LAYERS = 2

LANE = 128       # feature lanes padded to a full vreg width (lane-dense)
K_PAD = 128      # padded contraction dim of the fused aggregation matmul
NUM_W = len(RELATIONS) + len(NODE_TYPES)       # weight matrices per layer
MXU_OPERAND_DTYPE = jnp.bfloat16               # MXU operands only; epilogue f32


def _ceil8(n):
    return -(-n // 8) * 8


# ----------------------------------------------------------------------------
# One-time static packing (hoisted out of the forward path).
# ----------------------------------------------------------------------------
def build_structure():
    """Static packing metadata (pure Python, computed once)."""
    row_off, off = {}, 0
    for nt, n in NODE_TYPES.items():
        row_off[nt] = off
        off += _ceil8(n)
    n_rows = off                                   # multiple of 8

    # K-dim blocks of the fused aggregation matmul:
    #   one block per relation (message term) + one per node type (self-loop).
    # block = (k_start, k_size, src_row_start, src_row_size, weight_index)
    blocks, k = [], 0
    for w_idx, (s, _, _) in enumerate(RELATIONS):
        size = _ceil8(NODE_TYPES[s])
        blocks.append((k, size, row_off[s], size, w_idx))
        k += size
    for j, nt in enumerate(NODE_TYPES):
        size = _ceil8(NODE_TYPES[nt])
        blocks.append((k, size, row_off[nt], size, len(RELATIONS) + j))
        k += size
    assert k <= K_PAD, f"contraction blocks ({k}) exceed K_PAD ({K_PAD})"
    return row_off, n_rows, tuple(blocks), k


def _sym_normalize(a):
    """GraphConv norm='both': D_dst^{-1/2} A D_src^{-1/2} (degrees clamped >=1)."""
    deg_dst = jnp.maximum(a.sum(axis=1, keepdims=True), 1.0)
    deg_src = jnp.maximum(a.sum(axis=0, keepdims=True), 1.0)
    return a / jnp.sqrt(deg_dst) / jnp.sqrt(deg_src)


def build_a_big(adj_norm, row_off, n_rows, blocks):
    """Block-structured aggregation operand, precomputed ONCE (not per call):
    relation adjacencies + identity blocks for the per-type self-loop.
    Packed in bf16 since it only ever feeds the MXU."""
    a = jnp.zeros((n_rows, K_PAD), jnp.float32)
    for b_idx, (s, r, d) in enumerate(RELATIONS):
        k0 = blocks[b_idx][0]
        adj = adj_norm[(s, r, d)].astype(jnp.float32)         # (n_dst, n_src)
        a = a.at[row_off[d]:row_off[d] + adj.shape[0],
                 k0:k0 + adj.shape[1]].set(adj)
    for j, nt in enumerate(NODE_TYPES):
        k0 = blocks[len(RELATIONS) + j][0]
        n = NODE_TYPES[nt]
        a = a.at[row_off[nt]:row_off[nt] + n,
                 k0:k0 + n].set(jnp.eye(n, dtype=jnp.float32))
    return a.astype(MXU_OPERAND_DTYPE)


def init_params(key):
    """Deterministic parameter init (glorot-uniform-ish), torch-like layout."""
    params = []
    for i in range(NUM_LAYERS):
        d_in = DIM_IN if i == 0 else DIM_OUT
        scale = (6.0 / (d_in + DIM_OUT)) ** 0.5
        layer = {"w_rel": {}, "w_self": {}, "bias": {}}
        for j, (_, rel, _) in enumerate(RELATIONS):
            k = jax.random.fold_in(key, 1000 * i + j)
            layer["w_rel"][rel] = jax.random.uniform(
                k, (d_in, DIM_OUT), jnp.float32, -scale, scale)
        for j, nt in enumerate(NODE_TYPES):
            k = jax.random.fold_in(key, 2000 * (i + 1) + j)
            layer["w_self"][nt] = jax.random.uniform(
                k, (d_in, DIM_OUT), jnp.float32, -scale, scale)
            kb = jax.random.fold_in(key, 3000 * (i + 1) + j)
            layer["bias"][nt] = jax.random.uniform(
                kb, (1, DIM_OUT), jnp.float32, -0.1, 0.1)
        params.append(layer)
    return params


def pack_params(params, row_off, n_rows):
    """Zero-pad & stack weights/biases once at init (hoisted out of forward).
       w_packed: (NUM_LAYERS * NUM_W, LANE, LANE) bf16  ordered [rels..., selfs...]
       b_packed: (NUM_LAYERS, n_rows, LANE) f32         per-row bias slab"""
    w_packed = jnp.zeros((NUM_LAYERS * NUM_W, LANE, LANE), jnp.float32)
    b_packed = jnp.zeros((NUM_LAYERS, n_rows, LANE), jnp.float32)
    for l, layer in enumerate(params):
        mats = [layer["w_rel"][r] for (_, r, _) in RELATIONS]
        mats += [layer["w_self"][nt] for nt in NODE_TYPES]
        for j, w in enumerate(mats):
            w_packed = w_packed.at[l * NUM_W + j,
                                   :w.shape[0], :w.shape[1]].set(w)
        for nt in NODE_TYPES:
            n = NODE_TYPES[nt]
            b = jnp.broadcast_to(layer["bias"][nt], (n, DIM_OUT))
            b_packed = b_packed.at[l, row_off[nt]:row_off[nt] + n,
                                   :DIM_OUT].set(b)
    return w_packed.astype(MXU_OPERAND_DTYPE), b_packed


def pack_features(h_dict, row_off, n_rows):
    """Pack per-type features into one lane-padded slab (rows = node types)."""
    h = jnp.zeros((n_rows, LANE), jnp.float32)
    for nt, x in h_dict.items():
        h = h.at[row_off[nt]:row_off[nt] + x.shape[0],
                 :x.shape[1]].set(x.astype(jnp.float32))
    return h


# ----------------------------------------------------------------------------
# The fused Pallas kernel: whole HGNNStackStage in one invocation.
# ----------------------------------------------------------------------------
def _l2norm(x):
    # F.normalize(p=2, dim=-1, eps=1e-12); padded lanes are zero, so reducing
    # over all 128 lanes equals reducing over the real DIM_OUT lanes.
    # rsqrt goes to the (idle) EUP slot instead of a VPU sqrt + divide.
    sumsq = jnp.sum(x * x, axis=-1, keepdims=True)
    return x * jax.lax.rsqrt(jnp.maximum(sumsq, 1e-24))


def _make_stage_kernel(blocks, num_layers, k_total):
    mxu_dt = MXU_OPERAND_DTYPE
    tail = K_PAD - k_total                       # explicit zero tail rows

    def kernel(h_ref, a_ref, w_ref, b_ref, o_ref):
        # Everything (both layers, both node types, all relations) runs in a
        # single invocation; all tensors stay resident in VMEM / vregs.
        a = a_ref[...]                           # (n_rows, K_PAD) bf16, hoisted
        h = h_ref[...]                           # (n_rows, 128)  f32
        for l in range(num_layers):
            hm = h.astype(mxu_dt)
            # Feature transform H_src @ W per (relation | self-loop) block.
            # The blocks are K-contiguous, so the fused-aggregation operand XW
            # is just their concatenation plus an explicit zero tail (kept in
            # vregs -> no VMEM scratch, no vst/vld, no aliasing barrier).
            xw_blocks = []
            for (k0, ksz, s0, ssz, w_idx) in blocks:
                xw_blocks.append(jnp.dot(
                    hm[s0:s0 + ssz, :],
                    w_ref[l * NUM_W + w_idx],    # pre-packed bf16
                    preferred_element_type=jnp.float32))
            if tail:
                xw_blocks.append(jnp.zeros((tail, LANE), jnp.float32))
            xw = jnp.concatenate(xw_blocks, axis=0)        # (K_PAD, LANE) f32
            # ONE MXU push does every relation's aggregation + the self-loop:
            #   A_big (n_rows, K_PAD) @ XW (K_PAD, LANE), bf16 x bf16 -> f32.
            out = jnp.dot(a, xw.astype(mxu_dt),
                          preferred_element_type=jnp.float32)
            out = out + b_ref[l]                 # per-row bias slab (f32)
            out = jnp.maximum(out, 0.0)          # act = ReLU
            h = _l2norm(out)                     # per-layer has_l2norm=True
        # stage-level has_l2norm=True, fused into the epilogue (no extra kernel)
        o_ref[...] = _l2norm(h).astype(o_ref.dtype)
    return kernel


def make_forward(structure):
    """Build a jitted forward: feature packing, the single fused pallas_call,
    and the output unpacking all fuse into one dispatch chain."""
    row_off, n_rows, blocks, k_total = structure
    kernel = _make_stage_kernel(blocks, NUM_LAYERS, k_total)

    @jax.jit
    def forward(h_dict, a_big, w_packed, b_packed):
        h0 = pack_features(h_dict, row_off, n_rows)
        out = pl.pallas_call(
            kernel,
            out_shape=jax.ShapeDtypeStruct((n_rows, LANE), jnp.float32),
        )(h0, a_big, w_packed, b_packed)
        return {nt: out[row_off[nt]:row_off[nt] + NODE_TYPES[nt], :DIM_OUT]
                for nt in NODE_TYPES}

    return forward


# ----------------------------------------------------------------------------
# Pure-JAX reference (mirrors the PyTorch module math) for verification.
# ----------------------------------------------------------------------------
def reference_forward(adj_norm, h_dict, params):
    hp = jax.lax.Precision.HIGHEST
    h = {nt: x.astype(jnp.float32) for nt, x in h_dict.items()}
    for l in range(NUM_LAYERS):
        layer = params[l]
        h_new = {}
        for dst in NODE_TYPES:
            acc = jnp.dot(h[dst], layer["w_self"][dst], precision=hp)
            acc = acc + layer["bias"][dst]
            for (s, r, d) in RELATIONS:
                if d != dst:
                    continue
                msg = jnp.dot(h[s], layer["w_rel"][r], precision=hp)
                acc = acc + jnp.dot(adj_norm[(s, r, d)], msg, precision=hp)
            acc = jnp.maximum(acc, 0.0)
            nrm = jnp.sqrt(jnp.sum(acc * acc, axis=-1, keepdims=True))
            h_new[dst] = acc / jnp.maximum(nrm, 1e-12)
        h = h_new
    out = {}
    for nt, x in h.items():
        nrm = jnp.sqrt(jnp.sum(x * x, axis=-1, keepdims=True))
        out[nt] = x / jnp.maximum(nrm, 1e-12)
    return out


# ----------------------------------------------------------------------------
if __name__ == "__main__":
    key = jax.random.PRNGKey(0)

    # Deterministic heterogeneous graph (dense degree-normalized adjacency).
    adj_norm = {}
    for j, (s, r, d) in enumerate(RELATIONS):
        k = jax.random.fold_in(key, 7000 + j)
        a = jax.random.bernoulli(
            k, 0.3, (NODE_TYPES[d], NODE_TYPES[s])).astype(jnp.float32)
        adj_norm[(s, r, d)] = _sym_normalize(a)

    # Input node features per node type.
    h_dict = {}
    for j, (nt, n) in enumerate(NODE_TYPES.items()):
        k = jax.random.fold_in(key, 9000 + j)
        h_dict[nt] = jax.random.normal(k, (n, DIM_IN), jnp.float32)

    params = init_params(jax.random.fold_in(key, 12345))

    # --- one-time packing, hoisted out of the forward path ---
    structure = build_structure()
    row_off, n_rows, blocks, k_total = structure
    a_big = build_a_big(adj_norm, row_off, n_rows, blocks)
    w_packed, b_packed = pack_params(params, row_off, n_rows)

    forward = make_forward(structure)
    out = forward(h_dict, a_big, w_packed, b_packed)
    out = jax.tree_util.tree_map(jax.block_until_ready, out)

    # sanity: shapes, finiteness, unit (or zero) row norms
    for nt, n in NODE_TYPES.items():
        assert out[nt].shape == (n, DIM_OUT), out[nt].shape
        assert bool(jnp.all(jnp.isfinite(out[nt])))
        norms = jnp.linalg.norm(out[nt], axis=-1)
        assert bool(jnp.all((jnp.abs(norms - 1.0) < 1e-3) | (norms < 1e-6)))

    # numeric check vs. pure-JAX reference (tolerance covers bf16 MXU operands)
    ref = reference_forward(adj_norm, h_dict, params)
    for nt in NODE_TYPES:
        assert bool(jnp.allclose(out[nt], ref[nt], atol=3e-2, rtol=3e-2)), nt

    # TODO(synk): BatchNorm1d / dropout branches of HeteroGeneralLayer are
    # configured off (has_bn=False, dropout=0.0) and therefore not implemented.
    print("KERNEL_OK")
</pallas_src>

<mosaic_0001>
module attributes {stable_mosaic.version = 11 : i64} {
  func.func @kernel(%arg0: memref<40x128xf32, #tpu.memory_space<vmem>>, %arg1: memref<40x128xbf16, #tpu.memory_space<vmem>>, %arg2: memref<10x128x128xbf16, #tpu.memory_space<vmem>>, %arg3: memref<2x40x128xf32, #tpu.memory_space<vmem>>, %arg4: memref<40x128xf32, #tpu.memory_space<vmem>>) attributes {dimension_semantics = [], scalar_prefetch = 0 : i64, scratch_operands = 0 : i64, tpu.core_type = #tpu.core_type<tc>} {
    %c0 = arith.constant 0 : index
    %c0_0 = arith.constant 0 : index
    %0 = vector.load %arg1[%c0, %c0_0] : memref<40x128xbf16, #tpu.memory_space<vmem>>, vector<40x128xbf16>
    %c0_1 = arith.constant 0 : index
    %c0_2 = arith.constant 0 : index
    %1 = vector.load %arg0[%c0_1, %c0_2] : memref<40x128xf32, #tpu.memory_space<vmem>>, vector<40x128xf32>
    %2 = arith.truncf %1 : vector<40x128xf32> to vector<40x128xbf16>
    %3 = vector.extract_strided_slice %2 {offsets = [0, 0], sizes = [16, 128], strides = [1, 1]} : vector<40x128xbf16> to vector<16x128xbf16>
    %c0_3 = arith.constant 0 : index
    %c0_4 = arith.constant 0 : index
    %c0_5 = arith.constant 0 : index
    %4 = vector.load %arg2[%c0_3, %c0_4, %c0_5] : memref<10x128x128xbf16, #tpu.memory_space<vmem>>, vector<1x128x128xbf16>
    %5 = vector.shape_cast %4 : vector<1x128x128xbf16> to vector<128x128xbf16>
    %cst = arith.constant dense<0.000000e+00> : vector<16x128xf32>
    %6 = tpu.matmul %3, %5, %cst {dimension_numbers = #tpu.dot_dimension_numbers<[1], [0], [0], [1], [0, 0, 1, 1], [], []>} : vector<16x128xbf16>, vector<128x128xbf16>, vector<16x128xf32> -> vector<16x128xf32>
    %7 = vector.extract_strided_slice %2 {offsets = [0, 0], sizes = [16, 128], strides = [1, 1]} : vector<40x128xbf16> to vector<16x128xbf16>
    %c1 = arith.constant 1 : index
    %c0_6 = arith.constant 0 : index
    %c0_7 = arith.constant 0 : index
    %8 = vector.load %arg2[%c1, %c0_6, %c0_7] : memref<10x128x128xbf16, #tpu.memory_space<vmem>>, vector<1x128x128xbf16>
    %9 = vector.shape_cast %8 : vector<1x128x128xbf16> to vector<128x128xbf16>
    %cst_8 = arith.constant dense<0.000000e+00> : vector<16x128xf32>
    %10 = tpu.matmul %7, %9, %cst_8 {dimension_numbers = #tpu.dot_dimension_numbers<[1], [0], [0], [1], [0, 0, 1, 1], [], []>} : vector<16x128xbf16>, vector<128x128xbf16>, vector<16x128xf32> -> vector<16x128xf32>
    %11 = vector.extract_strided_slice %2 {offsets = [16, 0], sizes = [24, 128], strides = [1, 1]} : vector<40x128xbf16> to vector<24x128xbf16>
    %c2 = arith.constant 2 : index
    %c0_9 = arith.constant 0 : index
    %c0_10 = arith.constant 0 : index
    %12 = vector.load %arg2[%c2, %c0_9, %c0_10] : memref<10x128x128xbf16, #tpu.memory_space<vmem>>, vector<1x128x128xbf16>
    %13 = vector.shape_cast %12 : vector<1x128x128xbf16> to vector<128x128xbf16>
    %cst_11 = arith.constant dense<0.000000e+00> : vector<24x128xf32>
    %14 = tpu.matmul %11, %13, %cst_11 {dimension_numbers = #tpu.dot_dimension_numbers<[1], [0], [0], [1], [0, 0, 1, 1], [], []>} : vector<24x128xbf16>, vector<128x128xbf16>, vector<24x128xf32> -> vector<24x128xf32>
    %15 = vector.extract_strided_slice %2 {offsets = [0, 0], sizes = [16, 128], strides = [1, 1]} : vector<40x128xbf16> to vector<16x128xbf16>
    %c3 = arith.constant 3 : index
    %c0_12 = arith.constant 0 : index
    %c0_13 = arith.constant 0 : index
    %16 = vector.load %arg2[%c3, %c0_12, %c0_13] : memref<10x128x128xbf16, #tpu.memory_space<vmem>>, vector<1x128x128xbf16>
    %17 = vector.shape_cast %16 : vector<1x128x128xbf16> to vector<128x128xbf16>
    %cst_14 = arith.constant dense<0.000000e+00> : vector<16x128xf32>
    %18 = tpu.matmul %15, %17, %cst_14 {dimension_numbers = #tpu.dot_dimension_numbers<[1], [0], [0], [1], [0, 0, 1, 1], [], []>} : vector<16x128xbf16>, vector<128x128xbf16>, vector<16x128xf32> -> vector<16x128xf32>
    %19 = vector.extract_strided_slice %2 {offsets = [16, 0], sizes = [24, 128], strides = [1, 1]} : vector<40x128xbf16> to vector<24x128xbf16>
    %c4 = arith.constant 4 : index
    %c0_15 = arith.constant 0 : index
    %c0_16 = arith.constant 0 : index
    %20 = vector.load %arg2[%c4, %c0_15, %c0_16] : memref<10x128x128xbf16, #tpu.memory_space<vmem>>, vector<1x128x128xbf16>
    %21 = vector.shape_cast %20 : vector<1x128x128xbf16> to vector<128x128xbf16>
    %cst_17 = arith.constant dense<0.000000e+00> : vector<24x128xf32>
    %22 = tpu.matmul %19, %21, %cst_17 {dimension_numbers = #tpu.dot_dimension_numbers<[1], [0], [0], [1], [0, 0, 1, 1], [], []>} : vector<24x128xbf16>, vector<128x128xbf16>, vector<24x128xf32> -> vector<24x128xf32>
    %cst_18 = arith.constant 0.000000e+00 : f32
    %23 = vector.broadcast %cst_18 : f32 to vector<32x128xf32>
    %24 = tpu.concatenate %6, %10, %14, %18, %22, %23 in 0 : vector<16x128xf32>, vector<16x128xf32>, vector<24x128xf32>, vector<16x128xf32>, vector<24x128xf32>, vector<32x128xf32> -> vector<128x128xf32>
    %25 = arith.truncf %24 : vector<128x128xf32> to vector<128x128xbf16>
    %cst_19 = arith.constant dense<0.000000e+00> : vector<40x128xf32>
    %26 = tpu.matmul %0, %25, %cst_19 {dimension_numbers = #tpu.dot_dimension_numbers<[1], [0], [0], [1], [0, 0, 1, 1], [], []>} : vector<40x128xbf16>, vector<128x128xbf16>, vector<40x128xf32> -> vector<40x128xf32>
    %c0_20 = arith.constant 0 : index
    %c0_21 = arith.constant 0 : index
    %c0_22 = arith.constant 0 : index
    %27 = vector.load %arg3[%c0_20, %c0_21, %c0_22] : memref<2x40x128xf32, #tpu.memory_space<vmem>>, vector<1x40x128xf32>
    %28 = vector.shape_cast %27 : vector<1x40x128xf32> to vector<40x128xf32>
    %29 = arith.addf %26, %28 : vector<40x128xf32>
    %cst_23 = arith.constant 0.000000e+00 : f32
    %30 = vector.broadcast %cst_23 : f32 to vector<40x128xf32>
    %31 = arith.maximumf %29, %30 : vector<40x128xf32>
    %32 = arith.mulf %31, %31 : vector<40x128xf32>
    %cst_24 = arith.constant dense<0.000000e+00> : vector<40xf32>
    %33 = vector.multi_reduction <add>, %32, %cst_24 [1] : vector<40x128xf32> to vector<40xf32>
    %34 = vector.shape_cast %33 : vector<40xf32> to vector<40x1xf32>
    %cst_25 = arith.constant 1.000000e-24 : f32
    %35 = vector.broadcast %cst_25 : f32 to vector<40x1xf32>
    %36 = arith.maximumf %34, %35 : vector<40x1xf32>
    %37 = math.rsqrt %36 : vector<40x1xf32>
    %38 = vector.broadcast %37 : vector<40x1xf32> to vector<40x128xf32>
    %39 = arith.mulf %31, %38 : vector<40x128xf32>
    %40 = arith.truncf %39 : vector<40x128xf32> to vector<40x128xbf16>
    %41 = vector.extract_strided_slice %40 {offsets = [0, 0], sizes = [16, 128], strides = [1, 1]} : vector<40x128xbf16> to vector<16x128xbf16>
    %c5 = arith.constant 5 : index
    %c0_26 = arith.constant 0 : index
    %c0_27 = arith.constant 0 : index
    %42 = vector.load %arg2[%c5, %c0_26, %c0_27] : memref<10x128x128xbf16, #tpu.memory_space<vmem>>, vector<1x128x128xbf16>
    %43 = vector.shape_cast %42 : vector<1x128x128xbf16> to vector<128x128xbf16>
    %cst_28 = arith.constant dense<0.000000e+00> : vector<16x128xf32>
    %44 = tpu.matmul %41, %43, %cst_28 {dimension_numbers = #tpu.dot_dimension_numbers<[1], [0], [0], [1], [0, 0, 1, 1], [], []>} : vector<16x128xbf16>, vector<128x128xbf16>, vector<16x128xf32> -> vector<16x128xf32>
    %45 = vector.extract_strided_slice %40 {offsets = [0, 0], sizes = [16, 128], strides = [1, 1]} : vector<40x128xbf16> to vector<16x128xbf16>
    %c6 = arith.constant 6 : index
    %c0_29 = arith.constant 0 : index
    %c0_30 = arith.constant 0 : index
    %46 = vector.load %arg2[%c6, %c0_29, %c0_30] : memref<10x128x128xbf16, #tpu.memory_space<vmem>>, vector<1x128x128xbf16>
    %47 = vector.shape_cast %46 : vector<1x128x128xbf16> to vector<128x128xbf16>
    %cst_31 = arith.constant dense<0.000000e+00> : vector<16x128xf32>
    %48 = tpu.matmul %45, %47, %cst_31 {dimension_numbers = #tpu.dot_dimension_numbers<[1], [0], [0], [1], [0, 0, 1, 1], [], []>} : vector<16x128xbf16>, vector<128x128xbf16>, vector<16x128xf32> -> vector<16x128xf32>
    %49 = vector.extract_strided_slice %40 {offsets = [16, 0], sizes = [24, 128], strides = [1, 1]} : vector<40x128xbf16> to vector<24x128xbf16>
    %c7 = arith.constant 7 : index
    %c0_32 = arith.constant 0 : index
    %c0_33 = arith.constant 0 : index
    %50 = vector.load %arg2[%c7, %c0_32, %c0_33] : memref<10x128x128xbf16, #tpu.memory_space<vmem>>, vector<1x128x128xbf16>
    %51 = vector.shape_cast %50 : vector<1x128x128xbf16> to vector<128x128xbf16>
    %cst_34 = arith.constant dense<0.000000e+00> : vector<24x128xf32>
    %52 = tpu.matmul %49, %51, %cst_34 {dimension_numbers = #tpu.dot_dimension_numbers<[1], [0], [0], [1], [0, 0, 1, 1], [], []>} : vector<24x128xbf16>, vector<128x128xbf16>, vector<24x128xf32> -> vector<24x128xf32>
    %53 = vector.extract_strided_slice %40 {offsets = [0, 0], sizes = [16, 128], strides = [1, 1]} : vector<40x128xbf16> to vector<16x128xbf16>
    %c8 = arith.constant 8 : index
    %c0_35 = arith.constant 0 : index
    %c0_36 = arith.constant 0 : index
    %54 = vector.load %arg2[%c8, %c0_35, %c0_36] : memref<10x128x128xbf16, #tpu.memory_space<vmem>>, vector<1x128x128xbf16>
    %55 = vector.shape_cast %54 : vector<1x128x128xbf16> to vector<128x128xbf16>
    %cst_37 = arith.constant dense<0.000000e+00> : vector<16x128xf32>
    %56 = tpu.matmul %53, %55, %cst_37 {dimension_numbers = #tpu.dot_dimension_numbers<[1], [0], [0], [1], [0, 0, 1, 1], [], []>} : vector<16x128xbf16>, vector<128x128xbf16>, vector<16x128xf32> -> vector<16x128xf32>
    %57 = vector.extract_strided_slice %40 {offsets = [16, 0], sizes = [24, 128], strides = [1, 1]} : vector<40x128xbf16> to vector<24x128xbf16>
    %c9 = arith.constant 9 : index
    %c0_38 = arith.constant 0 : index
    %c0_39 = arith.constant 0 : index
    %58 = vector.load %arg2[%c9, %c0_38, %c0_39] : memref<10x128x128xbf16, #tpu.memory_space<vmem>>, vector<1x128x128xbf16>
    %59 = vector.shape_cast %58 : vector<1x128x128xbf16> to vector<128x128xbf16>
    %cst_40 = arith.constant dense<0.000000e+00> : vector<24x128xf32>
    %60 = tpu.matmul %57, %59, %cst_40 {dimension_numbers = #tpu.dot_dimension_numbers<[1], [0], [0], [1], [0, 0, 1, 1], [], []>} : vector<24x128xbf16>, vector<128x128xbf16>, vector<24x128xf32> -> vector<24x128xf32>
    %cst_41 = arith.constant 0.000000e+00 : f32
    %61 = vector.broadcast %cst_41 : f32 to vector<32x128xf32>
    %62 = tpu.concatenate %44, %48, %52, %56, %60, %61 in 0 : vector<16x128xf32>, vector<16x128xf32>, vector<24x128xf32>, vector<16x128xf32>, vector<24x128xf32>, vector<32x128xf32> -> vector<128x128xf32>
    %63 = arith.truncf %62 : vector<128x128xf32> to vector<128x128xbf16>
    %cst_42 = arith.constant dense<0.000000e+00> : vector<40x128xf32>
    %64 = tpu.matmul %0, %63, %cst_42 {dimension_numbers = #tpu.dot_dimension_numbers<[1], [0], [0], [1], [0, 0, 1, 1], [], []>} : vector<40x128xbf16>, vector<128x128xbf16>, vector<40x128xf32> -> vector<40x128xf32>
    %c1_43 = arith.constant 1 : index
    %c0_44 = arith.constant 0 : index
    %c0_45 = arith.constant 0 : index
    %65 = vector.load %arg3[%c1_43, %c0_44, %c0_45] : memref<2x40x128xf32, #tpu.memory_space<vmem>>, vector<1x40x128xf32>
    %66 = vector.shape_cast %65 : vector<1x40x128xf32> to vector<40x128xf32>
    %67 = arith.addf %64, %66 : vector<40x128xf32>
    %cst_46 = arith.constant 0.000000e+00 : f32
    %68 = vector.broadcast %cst_46 : f32 to vector<40x128xf32>
    %69 = arith.maximumf %67, %68 : vector<40x128xf32>
    %70 = arith.mulf %69, %69 : vector<40x128xf32>
    %cst_47 = arith.constant dense<0.000000e+00> : vector<40xf32>
    %71 = vector.multi_reduction <add>, %70, %cst_47 [1] : vector<40x128xf32> to vector<40xf32>
    %72 = vector.shape_cast %71 : vector<40xf32> to vector<40x1xf32>
    %cst_48 = arith.constant 1.000000e-24 : f32
    %73 = vector.broadcast %cst_48 : f32 to vector<40x1xf32>
    %74 = arith.maximumf %72, %73 : vector<40x1xf32>
    %75 = math.rsqrt %74 : vector<40x1xf32>
    %76 = vector.broadcast %75 : vector<40x1xf32> to vector<40x128xf32>
    %77 = arith.mulf %69, %76 : vector<40x128xf32>
    %78 = arith.mulf %77, %77 : vector<40x128xf32>
    %cst_49 = arith.constant dense<0.000000e+00> : vector<40xf32>
    %79 = vector.multi_reduction <add>, %78, %cst_49 [1] : vector<40x128xf32> to vector<40xf32>
    %80 = vector.shape_cast %79 : vector<40xf32> to vector<40x1xf32>
    %cst_50 = arith.constant 1.000000e-24 : f32
    %81 = vector.broadcast %cst_50 : f32 to vector<40x1xf32>
    %82 = arith.maximumf %80, %81 : vector<40x1xf32>
    %83 = math.rsqrt %82 : vector<40x1xf32>
    %84 = vector.broadcast %83 : vector<40x1xf32> to vector<40x128xf32>
    %85 = arith.mulf %77, %84 : vector<40x128xf32>
    %c0_51 = arith.constant 0 : index
    %c0_52 = arith.constant 0 : index
    %86 = vector.load %arg4[%c0_51, %c0_52] : memref<40x128xf32, #tpu.memory_space<vmem>>, vector<40x128xf32>
    tpu.vector_store %arg4[%c0_51, %c0_52], %85 {strides = array<i32>} : memref<40x128xf32, #tpu.memory_space<vmem>>, vector<40x128xf32>,
    return
  }
}

</mosaic_0001>

<llo_original>
// kernel: forward.1
$region0: #{forward.1}
  #allocation0 [shape = 'u32[]', space=smem, size = 0x4, offset = 0x4, fixed_abs, tag = 'smem constant byte address 0x4 - core index']
  #allocation1 [shape = 'u32[144,128]{1,0:T(1,128)}', space=vmem, size = 0x12000, scoped, tag = 'internal scratch']
  %s0 = inlined_call_operand.vmem [shape: f32[40,128], index: 0, kind: input, shape index: {}]
  %s1 = inlined_call_operand.vmem [shape: bf16[40,128], index: 1, kind: input, shape index: {}]
  %s2 = inlined_call_operand.hbm [shape: bf16[10,128,128], index: 2, kind: input, shape index: {}]
  %s3 = inlined_call_operand.vmem [shape: f32[2,40,128], index: 3, kind: input, shape index: {}]
  %s4 = inlined_call_operand.vmem [shape: f32[40,128], index: 4, kind: output, shape index: {}]
  %s5 = sld [smem:[#allocation0]]
  $region30: #{forward.1} parent=0
    _
  %s7 = ssub.s32 1, %s5
  %s8 = scalar_select 0, %s7, %s5
  $region1: #{forward.1} parent=0
    #allocation2 [shape = 'u8[327680]{0}', space=vmem, size = 0x50000, scoped, tag = 'input window, operand 2, single buffered']
    #allocation3 [shape = 's32[1]{0}', space=sflag, size = 0x4, scoped, tag = 'scoped memory for forward.1']
    %9 = vsyncpa [#allocation3], 0
    // Predicated region
    $region2: #{forward.1} parent=1 // pred_check
      _
    $region3: #{forward.1} parent=1 // pred_check_branch
      %11 = sbr.rel (0) target = $region5
    $region4: #{forward.1} parent=1 // pred_region
      _
    $region5: #{forward.1} parent=1 // pred_fallthru
      _
    // Predicated region
    $region6: #{forward.1} parent=1 // pred_check
      _
    $region7: #{forward.1} parent=1 // pred_check_branch
      %13 = sbr.rel (0) target = $region9
    $region8: #{forward.1} parent=1 // pred_region
      _
    $region9: #{forward.1} parent=1 // pred_fallthru
      _
    // Predicated region
    $region10: #{forward.1} parent=1 // pred_check
      _
    $region11: #{forward.1} parent=1 // pred_check_branch
      %15 = sbr.rel (0) target = $region13
    $region12: #{forward.1} parent=1 // pred_region
      %s17 = ssub.s32 10240, 10240
      %18 = vsyncadd [#allocation3], %s17
      %s19 = sshll.u32 [#allocation2], 4
      %s20 = int_to_ptr.vmem [resolvable:$true] %s19
      %25 = dma.hbm_to_vmem [thread:$0]  %s2, 10240, %s20, [#allocation3], 64, 64, 4
    $region13: #{forward.1} parent=1 // pred_fallthru
      _
    // Predicated region
    $region14: #{forward.1} parent=1 // pred_check
      _
    $region15: #{forward.1} parent=1 // pred_check_branch
      %27 = sbr.rel (0) target = $region17
    $region16: #{forward.1} parent=1 // pred_region
      _
    $region17: #{forward.1} parent=1 // pred_fallthru
      _
    // Predicated region
    $region18: #{forward.1} parent=1 // pred_check
      _
    $region19: #{forward.1} parent=1 // pred_check_branch
      %29 = sbr.rel (0) target = $region21
    $region20: #{forward.1} parent=1 // pred_region
      %30 = dma.done [#allocation3], 10240
    $region21: #{forward.1} parent=1 // pred_fallthru
      _
    %v32 = vld [vmem:[%s1] sm:$0xf]
    %v33 = vld [vmem:[%s1 + $0x4] sm:$0xf]
    %v34 = vld [vmem:[%s1 + $0x8] sm:$0xf]
    %v35 = vld [vmem:[%s1 + $0xc] sm:$0xf]
    %v36 = vld [vmem:[%s1 + $0x10] sm:$0xf]
    %v37 = vld [vmem:[%s0] sm:$0xff]
    %v38 = vld [vmem:[%s0 + $0x8] sm:$0xff]
    %v39 = vld [vmem:[%s0 + $0x10] sm:$0xff]
    %v40 = vld [vmem:[%s0 + $0x18] sm:$0xff]
    %v41 = vld [vmem:[%s0 + $0x20] sm:$0xff]
    %v42 = vpack.c.bf16 %v38, %v37
    %v43 = vpack.c.bf16 %v40, %v39
    %v44 = vpack.c.bf16 %v41, %v41
    %v45 = vld [vmem:[#allocation2] sm:$0xf]
    %v46 = vld [vmem:[#allocation2 + $0x4] sm:$0xf]
    %v47 = vld [vmem:[#allocation2 + $0x8] sm:$0xf]
    %v48 = vld [vmem:[#allocation2 + $0xc] sm:$0xf]
    %v49 = vld [vmem:[#allocation2 + $0x10] sm:$0xf]
    %v50 = vld [vmem:[#allocation2 + $0x14] sm:$0xf]
    %v51 = vld [vmem:[#allocation2 + $0x18] sm:$0xf]
    %v52 = vld [vmem:[#allocation2 + $0x1c] sm:$0xf]
    %v53 = vld [vmem:[#allocation2 + $0x20] sm:$0xf]
    %v54 = vld [vmem:[#allocation2 + $0x24] sm:$0xf]
    %v55 = vld [vmem:[#allocation2 + $0x28] sm:$0xf]
    %v56 = vld [vmem:[#allocation2 + $0x2c] sm:$0xf]
    %v57 = vld [vmem:[#allocation2 + $0x30] sm:$0xf]
    %v58 = vld [vmem:[#allocation2 + $0x34] sm:$0xf]
    %v59 = vld [vmem:[#allocation2 + $0x38] sm:$0xf]
    %v60 = vld [vmem:[#allocation2 + $0x3c] sm:$0xf]
    %v77 = vunpack.c.l.b16 %v45
    %v78 = vunpack.c.l.b16 %v46
    %v79 = vunpack.c.l.b16 %v47
    %v80 = vunpack.c.l.b16 %v48
    %v81 = vunpack.c.l.b16 %v49
    %v82 = vunpack.c.l.b16 %v50
    %v83 = vunpack.c.l.b16 %v51
    %v84 = vunpack.c.l.b16 %v52
    %v85 = vunpack.c.l.b16 %v53
    %v86 = vunpack.c.l.b16 %v54
    %v87 = vunpack.c.l.b16 %v55
    %v88 = vunpack.c.l.b16 %v56
    %v89 = vunpack.c.l.b16 %v57
    %v90 = vunpack.c.l.b16 %v58
    %v91 = vunpack.c.l.b16 %v59
    %v92 = vunpack.c.l.b16 %v60
    %v93 = vpack.c.b16 %v78, %v77
    %v94 = vpack.c.b16 %v80, %v79
    %v95 = vpack.c.b16 %v82, %v81
    %v96 = vpack.c.b16 %v84, %v83
    %v97 = vpack.c.b16 %v86, %v85
    %v98 = vpack.c.b16 %v88, %v87
    %v99 = vpack.c.b16 %v90, %v89
    %v100 = vpack.c.b16 %v92, %v91
    %109 = vmatprep.subr.bf16.mxu0 0
    %110 = vmatpush1.bf16.msra.mxu0 %v93
    %111 = vmatprep.subr.bf16.mxu0 0
    %112 = vmatpush1.bf16.msra.mxu0 %v94
    %113 = vmatprep.subr.bf16.mxu0 0
    %114 = vmatpush1.bf16.msra.mxu0 %v95
    %115 = vmatprep.subr.bf16.mxu0 0
    %116 = vmatpush1.bf16.msra.mxu0 %v96
    %117 = vmatprep.subr.bf16.mxu0 0
    %118 = vmatpush1.bf16.msra.mxu0 %v97
    %119 = vmatprep.subr.bf16.mxu0 0
    %120 = vmatpush1.bf16.msra.mxu0 %v98
    %121 = vmatprep.subr.bf16.mxu0 0
    %122 = vmatpush1.bf16.msra.mxu0 %v99
    %123 = vmatprep.subr.bf16.mxu0 0
    %124 = vmatpush1.bf16.msra.mxu0 %v100
    %125 = vmatprep.subr.bf16.mxu0 0
    %126 = vmatpush1.bf16.msra.mxu0 0
    %127 = vmatprep.subr.bf16.mxu0 0
    %128 = vmatpush1.bf16.msra.mxu0 0
    %129 = vmatprep.subr.bf16.mxu0 0
    %130 = vmatpush1.bf16.msra.mxu0 0
    %131 = vmatprep.subr.bf16.mxu0 0
    %132 = vmatpush1.bf16.msra.mxu0 0
    %133 = vmatprep.subr.bf16.mxu0 0
    %134 = vmatpush1.bf16.msra.mxu0 0
    %135 = vmatprep.subr.bf16.mxu0 0
    %136 = vmatpush1.bf16.msra.mxu0 0
    %137 = vmatprep.subr.bf16.mxu0 0
    %138 = vmatpush1.bf16.msra.mxu0 0
    %139 = vmatprep.subr.bf16.mxu0 0
    %140 = vmatpush1.bf16.msra.mxu0 0
    %141 = vmatprep.mubr.bf16.mxu0 0
    %142 = vmatmul.mubr.bf16.gmra.mrb[0].mxu0 %v42
    %v143 = vpop.f32.mrb[0].mxu0
    %v144 = vadd.f32 0.0, %v143
    %v145 = vpop.f32.mrb[0].mxu0
    %v146 = vpop.f32.mrb[0].mxu0
    %v147 = vadd.f32 0.0, %v146
    %v148 = vpop.f32.mrb[0].mxu0
    %149 = vdwg.mxu0
    %s150 = scalar_lea.vmem [#allocation2], 64
    %v151 = vld [vmem:[%s150] sm:$0xf]
    %v152 = vld [vmem:[%s150 + $0x4] sm:$0xf]
    %v153 = vld [vmem:[%s150 + $0x8] sm:$0xf]
    %v154 = vld [vmem:[%s150 + $0xc] sm:$0xf]
    %v155 = vld [vmem:[%s150 + $0x10] sm:$0xf]
    %v156 = vld [vmem:[%s150 + $0x14] sm:$0xf]
    %v157 = vld [vmem:[%s150 + $0x18] sm:$0xf]
    %v158 = vld [vmem:[%s150 + $0x1c] sm:$0xf]
    %v159 = vld [vmem:[%s150 + $0x20] sm:$0xf]
    %v160 = vld [vmem:[%s150 + $0x24] sm:$0xf]
    %v161 = vld [vmem:[%s150 + $0x28] sm:$0xf]
    %v162 = vld [vmem:[%s150 + $0x2c] sm:$0xf]
    %v163 = vld [vmem:[%s150 + $0x30] sm:$0xf]
    %v164 = vld [vmem:[%s150 + $0x34] sm:$0xf]
    %v165 = vld [vmem:[%s150 + $0x38] sm:$0xf]
    %v166 = vld [vmem:[%s150 + $0x3c] sm:$0xf]
    %v183 = vunpack.c.l.b16 %v151
    %v184 = vunpack.c.l.b16 %v152
    %v185 = vunpack.c.l.b16 %v153
    %v186 = vunpack.c.l.b16 %v154
    %v187 = vunpack.c.l.b16 %v155
    %v188 = vunpack.c.l.b16 %v156
    %v189 = vunpack.c.l.b16 %v157
    %v190 = vunpack.c.l.b16 %v158
    %v191 = vunpack.c.l.b16 %v159
    %v192 = vunpack.c.l.b16 %v160
    %v193 = vunpack.c.l.b16 %v161
    %v194 = vunpack.c.l.b16 %v162
    %v195 = vunpack.c.l.b16 %v163
    %v196 = vunpack.c.l.b16 %v164
    %v197 = vunpack.c.l.b16 %v165
    %v198 = vunpack.c.l.b16 %v166
    %v199 = vpack.c.b16 %v184, %v183
    %v200 = vpack.c.b16 %v186, %v185
    %v201 = vpack.c.b16 %v188, %v187
    %v202 = vpack.c.b16 %v190, %v189
    %v203 = vpack.c.b16 %v192, %v191
    %v204 = vpack.c.b16 %v194, %v193
    %v205 = vpack.c.b16 %v196, %v195
    %v206 = vpack.c.b16 %v198, %v197
    %215 = vmatprep.subr.bf16.mxu0 0
    %216 = vmatpush1.bf16.msra.mxu0 %v199
    %217 = vmatprep.subr.bf16.mxu0 0
    %218 = vmatpush1.bf16.msra.mxu0 %v200
    %219 = vmatprep.subr.bf16.mxu0 0
    %220 = vmatpush1.bf16.msra.mxu0 %v201
    %221 = vmatprep.subr.bf16.mxu0 0
    %222 = vmatpush1.bf16.msra.mxu0 %v202
    %223 = vmatprep.subr.bf16.mxu0 0
    %224 = vmatpush1.bf16.msra.mxu0 %v203
    %225 = vmatprep.subr.bf16.mxu0 0
    %226 = vmatpush1.bf16.msra.mxu0 %v204
    %227 = vmatprep.subr.bf16.mxu0 0
    %228 = vmatpush1.bf16.msra.mxu0 %v205
    %229 = vmatprep.subr.bf16.mxu0 0
    %230 = vmatpush1.bf16.msra.mxu0 %v206
    %231 = vmatprep.subr.bf16.mxu0 0
    %232 = vmatpush1.bf16.msra.mxu0 0
    %233 = vmatprep.subr.bf16.mxu0 0
    %234 = vmatpush1.bf16.msra.mxu0 0
    %235 = vmatprep.subr.bf16.mxu0 0
    %236 = vmatpush1.bf16.msra.mxu0 0
    %237 = vmatprep.subr.bf16.mxu0 0
    %238 = vmatpush1.bf16.msra.mxu0 0
    %239 = vmatprep.subr.bf16.mxu0 0
    %240 = vmatpush1.bf16.msra.mxu0 0
    %241 = vmatprep.subr.bf16.mxu0 0
    %242 = vmatpush1.bf16.msra.mxu0 0
    %243 = vmatprep.subr.bf16.mxu0 0
    %244 = vmatpush1.bf16.msra.mxu0 0
    %245 = vmatprep.subr.bf16.mxu0 0
    %246 = vmatpush1.bf16.msra.mxu0 0
    %247 = vmatprep.mubr.bf16.mxu0 0
    %248 = vmatmul.mubr.bf16.gmra.mrb[0].mxu0 %v42
    %v249 = vpop.f32.mrb[0].mxu0
    %v250 = vadd.f32 0.0, %v249
    %v251 = vpop.f32.mrb[0].mxu0
    %v252 = vpop.f32.mrb[0].mxu0
    %v253 = vadd.f32 0.0, %v252
    %v254 = vpop.f32.mrb[0].mxu0
    %255 = vdwg.mxu0
    %s256 = scalar_lea.vmem [#allocation2], 128
    %v257 = vld [vmem:[%s256] sm:$0xf]
    %v258 = vld [vmem:[%s256 + $0x4] sm:$0xf]
    %v259 = vld [vmem:[%s256 + $0x8] sm:$0xf]
    %v260 = vld [vmem:[%s256 + $0xc] sm:$0xf]
    %v261 = vld [vmem:[%s256 + $0x10] sm:$0xf]
    %v262 = vld [vmem:[%s256 + $0x14] sm:$0xf]
    %v263 = vld [vmem:[%s256 + $0x18] sm:$0xf]
    %v264 = vld [vmem:[%s256 + $0x1c] sm:$0xf]
    %v265 = vld [vmem:[%s256 + $0x20] sm:$0xf]
    %v266 = vld [vmem:[%s256 + $0x24] sm:$0xf]
    %v267 = vld [vmem:[%s256 + $0x28] sm:$0xf]
    %v268 = vld [vmem:[%s256 + $0x2c] sm:$0xf]
    %v269 = vld [vmem:[%s256 + $0x30] sm:$0xf]
    %v270 = vld [vmem:[%s256 + $0x34] sm:$0xf]
    %v271 = vld [vmem:[%s256 + $0x38] sm:$0xf]
    %v272 = vld [vmem:[%s256 + $0x3c] sm:$0xf]
    %v289 = vunpack.c.l.b16 %v257
    %v290 = vunpack.c.l.b16 %v258
    %v291 = vunpack.c.l.b16 %v259
    %v292 = vunpack.c.l.b16 %v260
    %v293 = vunpack.c.l.b16 %v261
    %v294 = vunpack.c.l.b16 %v262
    %v295 = vunpack.c.l.b16 %v263
    %v296 = vunpack.c.l.b16 %v264
    %v297 = vunpack.c.l.b16 %v265
    %v298 = vunpack.c.l.b16 %v266
    %v299 = vunpack.c.l.b16 %v267
    %v300 = vunpack.c.l.b16 %v268
    %v301 = vunpack.c.l.b16 %v269
    %v302 = vunpack.c.l.b16 %v270
    %v303 = vunpack.c.l.b16 %v271
    %v304 = vunpack.c.l.b16 %v272
    %v305 = vpack.c.b16 %v290, %v289
    %v306 = vpack.c.b16 %v292, %v291
    %v307 = vpack.c.b16 %v294, %v293
    %v308 = vpack.c.b16 %v296, %v295
    %v309 = vpack.c.b16 %v298, %v297
    %v310 = vpack.c.b16 %v300, %v299
    %v311 = vpack.c.b16 %v302, %v301
    %v312 = vpack.c.b16 %v304, %v303
    %321 = vmatprep.subr.bf16.mxu0 0
    %322 = vmatpush1.bf16.msra.mxu0 %v305
    %323 = vmatprep.subr.bf16.mxu0 0
    %324 = vmatpush1.bf16.msra.mxu0 %v306
    %325 = vmatprep.subr.bf16.mxu0 0
    %326 = vmatpush1.bf16.msra.mxu0 %v307
    %327 = vmatprep.subr.bf16.mxu0 0
    %328 = vmatpush1.bf16.msra.mxu0 %v308
    %329 = vmatprep.subr.bf16.mxu0 0
    %330 = vmatpush1.bf16.msra.mxu0 %v309
    %331 = vmatprep.subr.bf16.mxu0 0
    %332 = vmatpush1.bf16.msra.mxu0 %v310
    %333 = vmatprep.subr.bf16.mxu0 0
    %334 = vmatpush1.bf16.msra.mxu0 %v311
    %335 = vmatprep.subr.bf16.mxu0 0
    %336 = vmatpush1.bf16.msra.mxu0 %v312
    %337 = vmatprep.subr.bf16.mxu0 0
    %338 = vmatpush1.bf16.msra.mxu0 0
    %339 = vmatprep.subr.bf16.mxu0 0
    %340 = vmatpush1.bf16.msra.mxu0 0
    %341 = vmatprep.subr.bf16.mxu0 0
    %342 = vmatpush1.bf16.msra.mxu0 0
    %343 = vmatprep.subr.bf16.mxu0 0
    %344 = vmatpush1.bf16.msra.mxu0 0
    %345 = vmatprep.subr.bf16.mxu0 0
    %346 = vmatpush1.bf16.msra.mxu0 0
    %347 = vmatprep.subr.bf16.mxu0 0
    %348 = vmatpush1.bf16.msra.mxu0 0
    %349 = vmatprep.subr.bf16.mxu0 0
    %350 = vmatpush1.bf16.msra.mxu0 0
    %351 = vmatprep.subr.bf16.mxu0 0
    %352 = vmatpush1.bf16.msra.mxu0 0
    %353 = vmatprep.mubr.bf16.mxu0 0
    %354 = vmatmul.mubr.bf16.gmra.mrb[0].mxu0 %v43
    %v355 = vpop.f32.mrb[0].mxu0
    %v356 = vadd.f32 0.0, %v355
    %v357 = vpop.f32.mrb[0].mxu0
    %v358 = vpop.f32.mrb[0].mxu0
    %v359 = vadd.f32 0.0, %v358
    %v360 = vpop.f32.mrb[0].mxu0
    %361 = vmatprep.mubr.bf16.mxu0 0
    %362 = vmatmul.mubr.bf16.gmra.mrb[0].mxu0 %v44
    %v363 = vpop.f32.mrb[0].mxu0
    %v364 = vadd.f32 0.0, %v363
    %v365 = vpop.f32.mrb[0].mxu0
    %v366 = vpop.f32.mrb[0].mxu0
    %v367 = vpop.f32.mrb[0].mxu0
    %368 = vdwg.mxu0
    %s369 = scalar_lea.vmem [#allocation2], 192
    %v370 = vld [vmem:[%s369] sm:$0xf]
    %v371 = vld [vmem:[%s369 + $0x4] sm:$0xf]
    %v372 = vld [vmem:[%s369 + $0x8] sm:$0xf]
    %v373 = vld [vmem:[%s369 + $0xc] sm:$0xf]
    %v374 = vld [vmem:[%s369 + $0x10] sm:$0xf]
    %v375 = vld [vmem:[%s369 + $0x14] sm:$0xf]
    %v376 = vld [vmem:[%s369 + $0x18] sm:$0xf]
    %v377 = vld [vmem:[%s369 + $0x1c] sm:$0xf]
    %v378 = vld [vmem:[%s369 + $0x20] sm:$0xf]
    %v379 = vld [vmem:[%s369 + $0x24] sm:$0xf]
    %v380 = vld [vmem:[%s369 + $0x28] sm:$0xf]
    %v381 = vld [vmem:[%s369 + $0x2c] sm:$0xf]
    %v382 = vld [vmem:[%s369 + $0x30] sm:$0xf]
    %v383 = vld [vmem:[%s369 + $0x34] sm:$0xf]
    %v384 = vld [vmem:[%s369 + $0x38] sm:$0xf]
    %v385 = vld [vmem:[%s369 + $0x3c] sm:$0xf]
    %v402 = vunpack.c.l.b16 %v370
    %v403 = vunpack.c.l.b16 %v371
    %v404 = vunpack.c.l.b16 %v372
    %v405 = vunpack.c.l.b16 %v373
    %v406 = vunpack.c.l.b16 %v374
    %v407 = vunpack.c.l.b16 %v375
    %v408 = vunpack.c.l.b16 %v376
    %v409 = vunpack.c.l.b16 %v377
    %v410 = vunpack.c.l.b16 %v378
    %v411 = vunpack.c.l.b16 %v379
    %v412 = vunpack.c.l.b16 %v380
    %v413 = vunpack.c.l.b16 %v381
    %v414 = vunpack.c.l.b16 %v382
    %v415 = vunpack.c.l.b16 %v383
    %v416 = vunpack.c.l.b16 %v384
    %v417 = vunpack.c.l.b16 %v385
    %v418 = vpack.c.b16 %v403, %v402
    %v419 = vpack.c.b16 %v405, %v404
    %v420 = vpack.c.b16 %v407, %v406
    %v421 = vpack.c.b16 %v409, %v408
    %v422 = vpack.c.b16 %v411, %v410
    %v423 = vpack.c.b16 %v413, %v412
    %v424 = vpack.c.b16 %v415, %v414
    %v425 = vpack.c.b16 %v417, %v416
    %434 = vmatprep.subr.bf16.mxu0 0
    %435 = vmatpush1.bf16.msra.mxu0 %v418
    %436 = vmatprep.subr.bf16.mxu0 0
    %437 = vmatpush1.bf16.msra.mxu0 %v419
    %438 = vmatprep.subr.bf16.mxu0 0
    %439 = vmatpush1.bf16.msra.mxu0 %v420
    %440 = vmatprep.subr.bf16.mxu0 0
    %441 = vmatpush1.bf16.msra.mxu0 %v421
    %442 = vmatprep.subr.bf16.mxu0 0
    %443 = vmatpush1.bf16.msra.mxu0 %v422
    %444 = vmatprep.subr.bf16.mxu0 0
    %445 = vmatpush1.bf16.msra.mxu0 %v423
    %446 = vmatprep.subr.bf16.mxu0 0
    %447 = vmatpush1.bf16.msra.mxu0 %v424
    %448 = vmatprep.subr.bf16.mxu0 0
    %449 = vmatpush1.bf16.msra.mxu0 %v425
    %450 = vmatprep.subr.bf16.mxu0 0
    %451 = vmatpush1.bf16.msra.mxu0 0
    %452 = vmatprep.subr.bf16.mxu0 0
    %453 = vmatpush1.bf16.msra.mxu0 0
    %454 = vmatprep.subr.bf16.mxu0 0
    %455 = vmatpush1.bf16.msra.mxu0 0
    %456 = vmatprep.subr.bf16.mxu0 0
    %457 = vmatpush1.bf16.msra.mxu0 0
    %458 = vmatprep.subr.bf16.mxu0 0
    %459 = vmatpush1.bf16.msra.mxu0 0
    %460 = vmatprep.subr.bf16.mxu0 0
    %461 = vmatpush1.bf16.msra.mxu0 0
    %462 = vmatprep.subr.bf16.mxu0 0
    %463 = vmatpush1.bf16.msra.mxu0 0
    %464 = vmatprep.subr.bf16.mxu0 0
    %465 = vmatpush1.bf16.msra.mxu0 0
    %466 = vmatprep.mubr.bf16.mxu0 0
    %467 = vmatmul.mubr.bf16.gmra.mrb[0].mxu0 %v42
    %v468 = vpop.f32.mrb[0].mxu0
    %v469 = vadd.f32 0.0, %v468
    %v470 = vpop.f32.mrb[0].mxu0
    %v471 = vpop.f32.mrb[0].mxu0
    %v472 = vadd.f32 0.0, %v471
    %v473 = vpop.f32.mrb[0].mxu0
    %474 = vdwg.mxu0
    %s475 = scalar_lea.vmem [#allocation2], 256
    %v476 = vld [vmem:[%s475] sm:$0xf]
    %v477 = vld [vmem:[%s475 + $0x4] sm:$0xf]
    %v478 = vld [vmem:[%s475 + $0x8] sm:$0xf]
    %v479 = vld [vmem:[%s475 + $0xc] sm:$0xf]
    %v480 = vld [vmem:[%s475 + $0x10] sm:$0xf]
    %v481 = vld [vmem:[%s475 + $0x14] sm:$0xf]
    %v482 = vld [vmem:[%s475 + $0x18] sm:$0xf]
    %v483 = vld [vmem:[%s475 + $0x1c] sm:$0xf]
    %v484 = vld [vmem:[%s475 + $0x20] sm:$0xf]
    %v485 = vld [vmem:[%s475 + $0x24] sm:$0xf]
    %v486 = vld [vmem:[%s475 + $0x28] sm:$0xf]
    %v487 = vld [vmem:[%s475 + $0x2c] sm:$0xf]
    %v488 = vld [vmem:[%s475 + $0x30] sm:$0xf]
    %v489 = vld [vmem:[%s475 + $0x34] sm:$0xf]
    %v490 = vld [vmem:[%s475 + $0x38] sm:$0xf]
    %v491 = vld [vmem:[%s475 + $0x3c] sm:$0xf]
    %v508 = vunpack.c.l.b16 %v476
    %v509 = vunpack.c.l.b16 %v477
    %v510 = vunpack.c.l.b16 %v478
    %v511 = vunpack.c.l.b16 %v479
    %v512 = vunpack.c.l.b16 %v480
    %v513 = vunpack.c.l.b16 %v481
    %v514 = vunpack.c.l.b16 %v482
    %v515 = vunpack.c.l.b16 %v483
    %v516 = vunpack.c.l.b16 %v484
    %v517 = vunpack.c.l.b16 %v485
    %v518 = vunpack.c.l.b16 %v486
    %v519 = vunpack.c.l.b16 %v487
    %v520 = vunpack.c.l.b16 %v488
    %v521 = vunpack.c.l.b16 %v489
    %v522 = vunpack.c.l.b16 %v490
    %v523 = vunpack.c.l.b16 %v491
    %v524 = vpack.c.b16 %v509, %v508
    %v525 = vpack.c.b16 %v511, %v510
    %v526 = vpack.c.b16 %v513, %v512
    %v527 = vpack.c.b16 %v515, %v514
    %v528 = vpack.c.b16 %v517, %v516
    %v529 = vpack.c.b16 %v519, %v518
    %v530 = vpack.c.b16 %v521, %v520
    %v531 = vpack.c.b16 %v523, %v522
    %540 = vmatprep.subr.bf16.mxu0 0
    %541 = vmatpush1.bf16.msra.mxu0 %v524
    %542 = vmatprep.subr.bf16.mxu0 0
    %543 = vmatpush1.bf16.msra.mxu0 %v525
    %544 = vmatprep.subr.bf16.mxu0 0
    %545 = vmatpush1.bf16.msra.mxu0 %v526
    %546 = vmatprep.subr.bf16.mxu0 0
    %547 = vmatpush1.bf16.msra.mxu0 %v527
    %548 = vmatprep.subr.bf16.mxu0 0
    %549 = vmatpush1.bf16.msra.mxu0 %v528
    %550 = vmatprep.subr.bf16.mxu0 0
    %551 = vmatpush1.bf16.msra.mxu0 %v529
    %552 = vmatprep.subr.bf16.mxu0 0
    %553 = vmatpush1.bf16.msra.mxu0 %v530
    %554 = vmatprep.subr.bf16.mxu0 0
    %555 = vmatpush1.bf16.msra.mxu0 %v531
    %556 = vmatprep.subr.bf16.mxu0 0
    %557 = vmatpush1.bf16.msra.mxu0 0
    %558 = vmatprep.subr.bf16.mxu0 0
    %559 = vmatpush1.bf16.msra.mxu0 0
    %560 = vmatprep.subr.bf16.mxu0 0
    %561 = vmatpush1.bf16.msra.mxu0 0
    %562 = vmatprep.subr.bf16.mxu0 0
    %563 = vmatpush1.bf16.msra.mxu0 0
    %564 = vmatprep.subr.bf16.mxu0 0
    %565 = vmatpush1.bf16.msra.mxu0 0
    %566 = vmatprep.subr.bf16.mxu0 0
    %567 = vmatpush1.bf16.msra.mxu0 0
    %568 = vmatprep.subr.bf16.mxu0 0
    %569 = vmatpush1.bf16.msra.mxu0 0
    %570 = vmatprep.subr.bf16.mxu0 0
    %571 = vmatpush1.bf16.msra.mxu0 0
    %572 = vmatprep.mubr.bf16.mxu0 0
    %573 = vmatmul.mubr.bf16.gmra.mrb[0].mxu0 %v43
    %v574 = vpop.f32.mrb[0].mxu0
    %v575 = vadd.f32 0.0, %v574
    %v576 = vpop.f32.mrb[0].mxu0
    %v577 = vpop.f32.mrb[0].mxu0
    %v578 = vadd.f32 0.0, %v577
    %v579 = vpop.f32.mrb[0].mxu0
    %580 = vmatprep.mubr.bf16.mxu0 0
    %581 = vmatmul.mubr.bf16.gmra.mrb[0].mxu0 %v44
    %v582 = vpop.f32.mrb[0].mxu0
    %v583 = vadd.f32 0.0, %v582
    %v584 = vpop.f32.mrb[0].mxu0
    %v585 = vpop.f32.mrb[0].mxu0
    %v586 = vpop.f32.mrb[0].mxu0
    %587 = vdwg.mxu0
    %v588 = vpack.c.bf16 %v147, %v144
    %v589 = vpack.c.bf16 %v253, %v250
    %v590 = vpack.c.bf16 %v359, %v356
    %v591 = vpack.c.bf16 %v469, %v364
    %v592 = vpack.c.bf16 %v575, %v472
    %v593 = vpack.c.bf16 %v583, %v578
    %v594 = vpack.c.bf16 0.0, 0.0
    %v595 = vld [vmem:[%s3] sm:$0xff]
    %v596 = vld [vmem:[%s3 + $0x8] sm:$0xff]
    %v597 = vld [vmem:[%s3 + $0x10] sm:$0xff]
    %v598 = vld [vmem:[%s3 + $0x18] sm:$0xff]
    %v599 = vld [vmem:[%s3 + $0x20] sm:$0xff]
    %v605 = vunpack.c.l.b16 %v32
    %v606 = vunpack.c.l.b16 %v33
    %v607 = vunpack.c.l.b16 %v34
    %v608 = vunpack.c.l.b16 %v35
    %v609 = vunpack.c.l.b16 %v36
    %v610 = vpack.c.b16 %v606, %v605
    %v611 = vpack.c.b16 %v608, %v607
    %v612 = vpack.c.b16 %v609, %v609
    %616 = vmatprep.subr.bf16.mxu0 0
    %617 = vmatpush1.bf16.msra.mxu0 %v588
    %618 = vmatprep.subr.bf16.mxu0 0
    %619 = vmatpush1.bf16.msra.mxu0 %v589
    %620 = vmatprep.subr.bf16.mxu0 0
    %621 = vmatpush1.bf16.msra.mxu0 %v590
    %622 = vmatprep.subr.bf16.mxu0 0
    %623 = vmatpush1.bf16.msra.mxu0 %v591
    %624 = vmatprep.subr.bf16.mxu0 0
    %625 = vmatpush1.bf16.msra.mxu0 %v592
    %626 = vmatprep.subr.bf16.mxu0 0
    %627 = vmatpush1.bf16.msra.mxu0 %v593
    %628 = vmatprep.subr.bf16.mxu0 0
    %629 = vmatpush1.bf16.msra.mxu0 %v594
    %630 = vmatprep.subr.bf16.mxu0 0
    %631 = vmatpush1.bf16.msra.mxu0 %v594
    %632 = vmatprep.subr.bf16.mxu0 0
    %633 = vmatpush1.bf16.msra.mxu0 0
    %634 = vmatprep.subr.bf16.mxu0 0
    %635 = vmatpush1.bf16.msra.mxu0 0
    %636 = vmatprep.subr.bf16.mxu0 0
    %637 = vmatpush1.bf16.msra.mxu0 0
    %638 = vmatprep.subr.bf16.mxu0 0
    %639 = vmatpush1.bf16.msra.mxu0 0
    %640 = vmatprep.subr.bf16.mxu0 0
    %641 = vmatpush1.bf16.msra.mxu0 0
    %642 = vmatprep.subr.bf16.mxu0 0
    %643 = vmatpush1.bf16.msra.mxu0 0
    %644 = vmatprep.subr.bf16.mxu0 0
    %645 = vmatpush1.bf16.msra.mxu0 0
    %646 = vmatprep.subr.bf16.mxu0 0
    %647 = vmatpush1.bf16.msra.mxu0 0
    %648 = vmatprep.mubr.bf16.mxu0 0
    %649 = vmatmul.mubr.bf16.gmra.mrb[0].mxu0 %v610
    %v650 = vpop.f32.mrb[0].mxu0
    %v651 = vadd.f32 %v595, %v650
    %v652 = vpop.f32.mrb[0].mxu0
    %v653 = vpop.f32.mrb[0].mxu0
    %v654 = vadd.f32 %v596, %v653
    %v655 = vpop.f32.mrb[0].mxu0
    %656 = vmatprep.mubr.bf16.mxu0 0
    %657 = vmatmul.mubr.bf16.gmra.mrb[0].mxu0 %v611
    %v658 = vpop.f32.mrb[0].mxu0
    %v659 = vadd.f32 %v597, %v658
    %v660 = vpop.f32.mrb[0].mxu0
    %v661 = vpop.f32.mrb[0].mxu0
    %v662 = vadd.f32 %v598, %v661
    %v663 = vpop.f32.mrb[0].mxu0
    %664 = vmatprep.mubr.bf16.mxu0 0
    %665 = vmatmul.mubr.bf16.gmra.mrb[0].mxu0 %v612
    %v666 = vpop.f32.mrb[0].mxu0
    %v667 = vadd.f32 %v599, %v666
    %v668 = vpop.f32.mrb[0].mxu0
    %v669 = vpop.f32.mrb[0].mxu0
    %v670 = vpop.f32.mrb[0].mxu0
    %671 = vdwg.mxu0
    %v672 = vmax.f32 %v651, 0.0
    %v673 = vmax.f32 %v654, 0.0
    %v674 = vmax.f32 %v659, 0.0
    %v675 = vmax.f32 %v662, 0.0
    %v676 = vmax.f32 %v667, 0.0
    %v677 = vmul.f32 %v672, %v672
    %v678 = vmul.f32 %v673, %v673
    %v679 = vmul.f32 %v674, %v674
    %v680 = vmul.f32 %v675, %v675
    %v681 = vmul.f32 %v676, %v676
    %682 = vadd.xlane.f32.xlu0 %v677
    %v683 = vpop.xlane.xlu0 %682
    %684 = vadd.xlane.f32.xlu0 %v678
    %v685 = vpop.xlane.xlu0 %684
    %686 = vadd.xlane.f32.xlu0 %v679
    %v687 = vpop.xlane.xlu0 %686
    %688 = vadd.xlane.f32.xlu0 %v680
    %v689 = vpop.xlane.xlu0 %688
    %690 = vadd.xlane.f32.xlu0 %v681
    %v691 = vpop.xlane.xlu0 %690
    %v692 = vmax.f32 %v683, 1e-24
    %v693 = vmax.f32 %v685, 1e-24
    %v694 = vmax.f32 %v687, 1e-24
    %v695 = vmax.f32 %v689, 1e-24
    %v696 = vmax.f32 %v691, 1e-24
    %v697 = vrsqrt.pop %v692
    %v698 = vrsqrt.pop %v693
    %v699 = vrsqrt.pop %v694
    %v700 = vrsqrt.pop %v695
    %v701 = vrsqrt.pop %v696
    %v702 = vmul.f32 %v672, %v697
    %v703 = vmul.f32 %v673, %v698
    %v704 = vmul.f32 %v674, %v699
    %v705 = vmul.f32 %v675, %v700
    %v706 = vmul.f32 %v676, %v701
    %v707 = vpack.c.bf16 %v703, %v702
    %v708 = vpack.c.bf16 %v705, %v704
    %v709 = vpack.c.bf16 %v706, %v706
    %s710 = scalar_lea.vmem [#allocation2], 320
    %v711 = vld [vmem:[%s710] sm:$0xf]
    %v712 = vld [vmem:[%s710 + $0x4] sm:$0xf]
    %v713 = vld [vmem:[%s710 + $0x8] sm:$0xf]
    %v714 = vld [vmem:[%s710 + $0xc] sm:$0xf]
    %v715 = vld [vmem:[%s710 + $0x10] sm:$0xf]
    %v716 = vld [vmem:[%s710 + $0x14] sm:$0xf]
    %v717 = vld [vmem:[%s710 + $0x18] sm:$0xf]
    %v718 = vld [vmem:[%s710 + $0x1c] sm:$0xf]
    %v719 = vld [vmem:[%s710 + $0x20] sm:$0xf]
    %v720 = vld [vmem:[%s710 + $0x24] sm:$0xf]
    %v721 = vld [vmem:[%s710 + $0x28] sm:$0xf]
    %v722 = vld [vmem:[%s710 + $0x2c] sm:$0xf]
    %v723 = vld [vmem:[%s710 + $0x30] sm:$0xf]
    %v724 = vld [vmem:[%s710 + $0x34] sm:$0xf]
    %v725 = vld [vmem:[%s710 + $0x38] sm:$0xf]
    %v726 = vld [vmem:[%s710 + $0x3c] sm:$0xf]
    %v743 = vunpack.c.l.b16 %v711
    %v744 = vunpack.c.l.b16 %v712
    %v745 = vunpack.c.l.b16 %v713
    %v746 = vunpack.c.l.b16 %v714
    %v747 = vunpack.c.l.b16 %v715
    %v748 = vunpack.c.l.b16 %v716
    %v749 = vunpack.c.l.b16 %v717
    %v750 = vunpack.c.l.b16 %v718
    %v751 = vunpack.c.l.b16 %v719
    %v752 = vunpack.c.l.b16 %v720
    %v753 = vunpack.c.l.b16 %v721
    %v754 = vunpack.c.l.b16 %v722
    %v755 = vunpack.c.l.b16 %v723
    %v756 = vunpack.c.l.b16 %v724
    %v757 = vunpack.c.l.b16 %v725
    %v758 = vunpack.c.l.b16 %v726
    %v759 = vpack.c.b16 %v744, %v743
    %v760 = vpack.c.b16 %v746, %v745
    %v761 = vpack.c.b16 %v748, %v747
    %v762 = vpack.c.b16 %v750, %v749
    %v763 = vpack.c.b16 %v752, %v751
    %v764 = vpack.c.b16 %v754, %v753
    %v765 = vpack.c.b16 %v756, %v755
    %v766 = vpack.c.b16 %v758, %v757
    %775 = vmatprep.subr.bf16.mxu0 0
    %776 = vmatpush1.bf16.msra.mxu0 %v759
    %777 = vmatprep.subr.bf16.mxu0 0
    %778 = vmatpush1.bf16.msra.mxu0 %v760
    %779 = vmatprep.subr.bf16.mxu0 0
    %780 = vmatpush1.bf16.msra.mxu0 %v761
    %781 = vmatprep.subr.bf16.mxu0 0
    %782 = vmatpush1.bf16.msra.mxu0 %v762
    %783 = vmatprep.subr.bf16.mxu0 0
    %784 = vmatpush1.bf16.msra.mxu0 %v763
    %785 = vmatprep.subr.bf16.mxu0 0
    %786 = vmatpush1.bf16.msra.mxu0 %v764
    %787 = vmatprep.subr.bf16.mxu0 0
    %788 = vmatpush1.bf16.msra.mxu0 %v765
    %789 = vmatprep.subr.bf16.mxu0 0
    %790 = vmatpush1.bf16.msra.mxu0 %v766
    %791 = vmatprep.subr.bf16.mxu0 0
    %792 = vmatpush1.bf16.msra.mxu0 0
    %793 = vmatprep.subr.bf16.mxu0 0
    %794 = vmatpush1.bf16.msra.mxu0 0
    %795 = vmatprep.subr.bf16.mxu0 0
    %796 = vmatpush1.bf16.msra.mxu0 0
    %797 = vmatprep.subr.bf16.mxu0 0
    %798 = vmatpush1.bf16.msra.mxu0 0
    %799 = vmatprep.subr.bf16.mxu0 0
    %800 = vmatpush1.bf16.msra.mxu0 0
    %801 = vmatprep.subr.bf16.mxu0 0
    %802 = vmatpush1.bf16.msra.mxu0 0
    %803 = vmatprep.subr.bf16.mxu0 0
    %804 = vmatpush1.bf16.msra.mxu0 0
    %805 = vmatprep.subr.bf16.mxu0 0
    %806 = vmatpush1.bf16.msra.mxu0 0
    %807 = vmatprep.mubr.bf16.mxu0 0
    %808 = vmatmul.mubr.bf16.gmra.mrb[0].mxu0 %v707
    %v809 = vpop.f32.mrb[0].mxu0
    %v810 = vadd.f32 0.0, %v809
    %v811 = vpop.f32.mrb[0].mxu0
    %v812 = vpop.f32.mrb[0].mxu0
    %v813 = vadd.f32 0.0, %v812
    %v814 = vpop.f32.mrb[0].mxu0
    %815 = vdwg.mxu0
    %s816 = scalar_lea.vmem [#allocation2], 384
    %v817 = vld [vmem:[%s816] sm:$0xf]
    %v818 = vld [vmem:[%s816 + $0x4] sm:$0xf]
    %v819 = vld [vmem:[%s816 + $0x8] sm:$0xf]
    %v820 = vld [vmem:[%s816 + $0xc] sm:$0xf]
    %v821 = vld [vmem:[%s816 + $0x10] sm:$0xf]
    %v822 = vld [vmem:[%s816 + $0x14] sm:$0xf]
    %v823 = vld [vmem:[%s816 + $0x18] sm:$0xf]
    %v824 = vld [vmem:[%s816 + $0x1c] sm:$0xf]
    %v825 = vld [vmem:[%s816 + $0x20] sm:$0xf]
    %v826 = vld [vmem:[%s816 + $0x24] sm:$0xf]
    %v827 = vld [vmem:[%s816 + $0x28] sm:$0xf]
    %v828 = vld [vmem:[%s816 + $0x2c] sm:$0xf]
    %v829 = vld [vmem:[%s816 + $0x30] sm:$0xf]
    %v830 = vld [vmem:[%s816 + $0x34] sm:$0xf]
    %v831 = vld [vmem:[%s816 + $0x38] sm:$0xf]
    %v832 = vld [vmem:[%s816 + $0x3c] sm:$0xf]
    %v849 = vunpack.c.l.b16 %v817
    %v850 = vunpack.c.l.b16 %v818
    %v851 = vunpack.c.l.b16 %v819
    %v852 = vunpack.c.l.b16 %v820
    %v853 = vunpack.c.l.b16 %v821
    %v854 = vunpack.c.l.b16 %v822
    %v855 = vunpack.c.l.b16 %v823
    %v856 = vunpack.c.l.b16 %v824
    %v857 = vunpack.c.l.b16 %v825
    %v858 = vunpack.c.l.b16 %v826
    %v859 = vunpack.c.l.b16 %v827
    %v860 = vunpack.c.l.b16 %v828
    %v861 = vunpack.c.l.b16 %v829
    %v862 = vunpack.c.l.b16 %v830
    %v863 = vunpack.c.l.b16 %v831
    %v864 = vunpack.c.l.b16 %v832
    %v865 = vpack.c.b16 %v850, %v849
    %v866 = vpack.c.b16 %v852, %v851
    %v867 = vpack.c.b16 %v854, %v853
    %v868 = vpack.c.b16 %v856, %v855
    %v869 = vpack.c.b16 %v858, %v857
    %v870 = vpack.c.b16 %v860, %v859
    %v871 = vpack.c.b16 %v862, %v861
    %v872 = vpack.c.b16 %v864, %v863
    %881 = vmatprep.subr.bf16.mxu0 0
    %882 = vmatpush1.bf16.msra.mxu0 %v865
    %883 = vmatprep.subr.bf16.mxu0 0
    %884 = vmatpush1.bf16.msra.mxu0 %v866
    %885 = vmatprep.subr.bf16.mxu0 0
    %886 = vmatpush1.bf16.msra.mxu0 %v867
    %887 = vmatprep.subr.bf16.mxu0 0
    %888 = vmatpush1.bf16.msra.mxu0 %v868
    %889 = vmatprep.subr.bf16.mxu0 0
    %890 = vmatpush1.bf16.msra.mxu0 %v869
    %891 = vmatprep.subr.bf16.mxu0 0
    %892 = vmatpush1.bf16.msra.mxu0 %v870
    %893 = vmatprep.subr.bf16.mxu0 0
    %894 = vmatpush1.bf16.msra.mxu0 %v871
    %895 = vmatprep.subr.bf16.mxu0 0
    %896 = vmatpush1.bf16.msra.mxu0 %v872
    %897 = vmatprep.subr.bf16.mxu0 0
    %898 = vmatpush1.bf16.msra.mxu0 0
    %899 = vmatprep.subr.bf16.mxu0 0
    %900 = vmatpush1.bf16.msra.mxu0 0
    %901 = vmatprep.subr.bf16.mxu0 0
    %902 = vmatpush1.bf16.msra.mxu0 0
    %903 = vmatprep.subr.bf16.mxu0 0
    %904 = vmatpush1.bf16.msra.mxu0 0
    %905 = vmatprep.subr.bf16.mxu0 0
    %906 = vmatpush1.bf16.msra.mxu0 0
    %907 = vmatprep.subr.bf16.mxu0 0
    %908 = vmatpush1.bf16.msra.mxu0 0
    %909 = vmatprep.subr.bf16.mxu0 0
    %910 = vmatpush1.bf16.msra.mxu0 0
    %911 = vmatprep.subr.bf16.mxu0 0
    %912 = vmatpush1.bf16.msra.mxu0 0
    %913 = vmatprep.mubr.bf16.mxu0 0
    %914 = vmatmul.mubr.bf16.gmra.mrb[0].mxu0 %v707
    %v915 = vpop.f32.mrb[0].mxu0
    %v916 = vadd.f32 0.0, %v915
    %v917 = vpop.f32.mrb[0].mxu0
    %v918 = vpop.f32.mrb[0].mxu0
    %v919 = vadd.f32 0.0, %v918
    %v920 = vpop.f32.mrb[0].mxu0
    %921 = vdwg.mxu0
    %s922 = scalar_lea.vmem [#allocation2], 448
    %v923 = vld [vmem:[%s922] sm:$0xf]
    %v924 = vld [vmem:[%s922 + $0x4] sm:$0xf]
    %v925 = vld [vmem:[%s922 + $0x8] sm:$0xf]
    %v926 = vld [vmem:[%s922 + $0xc] sm:$0xf]
    %v927 = vld [vmem:[%s922 + $0x10] sm:$0xf]
    %v928 = vld [vmem:[%s922 + $0x14] sm:$0xf]
    %v929 = vld [vmem:[%s922 + $0x18] sm:$0xf]
    %v930 = vld [vmem:[%s922 + $0x1c] sm:$0xf]
    %v931 = vld [vmem:[%s922 + $0x20] sm:$0xf]
    %v932 = vld [vmem:[%s922 + $0x24] sm:$0xf]
    %v933 = vld [vmem:[%s922 + $0x28] sm:$0xf]
    %v934 = vld [vmem:[%s922 + $0x2c] sm:$0xf]
    %v935 = vld [vmem:[%s922 + $0x30] sm:$0xf]
    %v936 = vld [vmem:[%s922 + $0x34] sm:$0xf]
    %v937 = vld [vmem:[%s922 + $0x38] sm:$0xf]
    %v938 = vld [vmem:[%s922 + $0x3c] sm:$0xf]
    %v955 = vunpack.c.l.b16 %v923
    %v956 = vunpack.c.l.b16 %v924
    %v957 = vunpack.c.l.b16 %v925
    %v958 = vunpack.c.l.b16 %v926
    %v959 = vunpack.c.l.b16 %v927
    %v960 = vunpack.c.l.b16 %v928
    %v961 = vunpack.c.l.b16 %v929
    %v962 = vunpack.c.l.b16 %v930
    %v963 = vunpack.c.l.b16 %v931
    %v964 = vunpack.c.l.b16 %v932
    %v965 = vunpack.c.l.b16 %v933
    %v966 = vunpack.c.l.b16 %v934
    %v967 = vunpack.c.l.b16 %v935
    %v968 = vunpack.c.l.b16 %v936
    %v969 = vunpack.c.l.b16 %v937
    %v970 = vunpack.c.l.b16 %v938
    %v971 = vpack.c.b16 %v956, %v955
    %v972 = vpack.c.b16 %v958, %v957
    %v973 = vpack.c.b16 %v960, %v959
    %v974 = vpack.c.b16 %v962, %v961
    %v975 = vpack.c.b16 %v964, %v963
    %v976 = vpack.c.b16 %v966, %v965
    %v977 = vpack.c.b16 %v968, %v967
    %v978 = vpack.c.b16 %v970, %v969
    %987 = vmatprep.subr.bf16.mxu0 0
    %988 = vmatpush1.bf16.msra.mxu0 %v971
    %989 = vmatprep.subr.bf16.mxu0 0
    %990 = vmatpush1.bf16.msra.mxu0 %v972
    %991 = vmatprep.subr.bf16.mxu0 0
    %992 = vmatpush1.bf16.msra.mxu0 %v973
    %993 = vmatprep.subr.bf16.mxu0 0
    %994 = vmatpush1.bf16.msra.mxu0 %v974
    %995 = vmatprep.subr.bf16.mxu0 0
    %996 = vmatpush1.bf16.msra.mxu0 %v975
    %997 = vmatprep.subr.bf16.mxu0 0
    %998 = vmatpush1.bf16.msra.mxu0 %v976
    %999 = vmatprep.subr.bf16.mxu0 0
    %1000 = vmatpush1.bf16.msra.mxu0 %v977
    %1001 = vmatprep.subr.bf16.mxu0 0
    %1002 = vmatpush1.bf16.msra.mxu0 %v978
    %1003 = vmatprep.subr.bf16.mxu0 0
    %1004 = vmatpush1.bf16.msra.mxu0 0
    %1005 = vmatprep.subr.bf16.mxu0 0
    %1006 = vmatpush1.bf16.msra.mxu0 0
    %1007 = vmatprep.subr.bf16.mxu0 0
    %1008 = vmatpush1.bf16.msra.mxu0 0
    %1009 = vmatprep.subr.bf16.mxu0 0
    %1010 = vmatpush1.bf16.msra.mxu0 0
    %1011 = vmatprep.subr.bf16.mxu0 0
    %1012 = vmatpush1.bf16.msra.mxu0 0
    %1013 = vmatprep.subr.bf16.mxu0 0
    %1014 = vmatpush1.bf16.msra.mxu0 0
    %1015 = vmatprep.subr.bf16.mxu0 0
    %1016 = vmatpush1.bf16.msra.mxu0 0
    %1017 = vmatprep.subr.bf16.mxu0 0
    %1018 = vmatpush1.bf16.msra.mxu0 0
    %1019 = vmatprep.mubr.bf16.mxu0 0
    %1020 = vmatmul.mubr.bf16.gmra.mrb[0].mxu0 %v708
    %v1021 = vpop.f32.mrb[0].mxu0
    %v1022 = vadd.f32 0.0, %v1021
    %v1023 = vpop.f32.mrb[0].mxu0
    %v1024 = vpop.f32.mrb[0].mxu0
    %v1025 = vadd.f32 0.0, %v1024
    %v1026 = vpop.f32.mrb[0].mxu0
    %1027 = vmatprep.mubr.bf16.mxu0 0
    %1028 = vmatmul.mubr.bf16.gmra.mrb[0].mxu0 %v709
    %v1029 = vpop.f32.mrb[0].mxu0
    %v1030 = vadd.f32 0.0, %v1029
    %v1031 = vpop.f32.mrb[0].mxu0
    %v1032 = vpop.f32.mrb[0].mxu0
    %v1033 = vpop.f32.mrb[0].mxu0
    %1034 = vdwg.mxu0
    %s1035 = scalar_lea.vmem [#allocation2], 512
    %v1036 = vld [vmem:[%s1035] sm:$0xf]
    %v1037 = vld [vmem:[%s1035 + $0x4] sm:$0xf]
    %v1038 = vld [vmem:[%s1035 + $0x8] sm:$0xf]
    %v1039 = vld [vmem:[%s1035 + $0xc] sm:$0xf]
    %v1040 = vld [vmem:[%s1035 + $0x10] sm:$0xf]
    %v1041 = vld [vmem:[%s1035 + $0x14] sm:$0xf]
    %v1042 = vld [vmem:[%s1035 + $0x18] sm:$0xf]
    %v1043 = vld [vmem:[%s1035 + $0x1c] sm:$0xf]
    %v1044 = vld [vmem:[%s1035 + $0x20] sm:$0xf]
    %v1045 = vld [vmem:[%s1035 + $0x24] sm:$0xf]
    %v1046 = vld [vmem:[%s1035 + $0x28] sm:$0xf]
    %v1047 = vld [vmem:[%s1035 + $0x2c] sm:$0xf]
    %v1048 = vld [vmem:[%s1035 + $0x30] sm:$0xf]
    %v1049 = vld [vmem:[%s1035 + $0x34] sm:$0xf]
    %v1050 = vld [vmem:[%s1035 + $0x38] sm:$0xf]
    %v1051 = vld [vmem:[%s1035 + $0x3c] sm:$0xf]
    %v1068 = vunpack.c.l.b16 %v1036
    %v1069 = vunpack.c.l.b16 %v1037
    %v1070 = vunpack.c.l.b16 %v1038
    %v1071 = vunpack.c.l.b16 %v1039
    %v1072 = vunpack.c.l.b16 %v1040
    %v1073 = vunpack.c.l.b16 %v1041
    %v1074 = vunpack.c.l.b16 %v1042
    %v1075 = vunpack.c.l.b16 %v1043
    %v1076 = vunpack.c.l.b16 %v1044
    %v1077 = vunpack.c.l.b16 %v1045
    %v1078 = vunpack.c.l.b16 %v1046
    %v1079 = vunpack.c.l.b16 %v1047
    %v1080 = vunpack.c.l.b16 %v1048
    %v1081 = vunpack.c.l.b16 %v1049
    %v1082 = vunpack.c.l.b16 %v1050
    %v1083 = vunpack.c.l.b16 %v1051
    %v1084 = vpack.c.b16 %v1069, %v1068
    %v1085 = vpack.c.b16 %v1071, %v1070
    %v1086 = vpack.c.b16 %v1073, %v1072
    %v1087 = vpack.c.b16 %v1075, %v1074
    %v1088 = vpack.c.b16 %v1077, %v1076
    %v1089 = vpack.c.b16 %v1079, %v1078
    %v1090 = vpack.c.b16 %v1081, %v1080
    %v1091 = vpack.c.b16 %v1083, %v1082
    %1100 = vmatprep.subr.bf16.mxu0 0
    %1101 = vmatpush1.bf16.msra.mxu0 %v1084
    %1102 = vmatprep.subr.bf16.mxu0 0
    %1103 = vmatpush1.bf16.msra.mxu0 %v1085
    %1104 = vmatprep.subr.bf16.mxu0 0
    %1105 = vmatpush1.bf16.msra.mxu0 %v1086
    %1106 = vmatprep.subr.bf16.mxu0 0
    %1107 = vmatpush1.bf16.msra.mxu0 %v1087
    %1108 = vmatprep.subr.bf16.mxu0 0
    %1109 = vmatpush1.bf16.msra.mxu0 %v1088
    %1110 = vmatprep.subr.bf16.mxu0 0
    %1111 = vmatpush1.bf16.msra.mxu0 %v1089
    %1112 = vmatprep.subr.bf16.mxu0 0
    %1113 = vmatpush1.bf16.msra.mxu0 %v1090
    %1114 = vmatprep.subr.bf16.mxu0 0
    %1115 = vmatpush1.bf16.msra.mxu0 %v1091
    %1116 = vmatprep.subr.bf16.mxu0 0
    %1117 = vmatpush1.bf16.msra.mxu0 0
    %1118 = vmatprep.subr.bf16.mxu0 0
    %1119 = vmatpush1.bf16.msra.mxu0 0
    %1120 = vmatprep.subr.bf16.mxu0 0
    %1121 = vmatpush1.bf16.msra.mxu0 0
    %1122 = vmatprep.subr.bf16.mxu0 0
    %1123 = vmatpush1.bf16.msra.mxu0 0
    %1124 = vmatprep.subr.bf16.mxu0 0
    %1125 = vmatpush1.bf16.msra.mxu0 0
    %1126 = vmatprep.subr.bf16.mxu0 0
    %1127 = vmatpush1.bf16.msra.mxu0 0
    %1128 = vmatprep.subr.bf16.mxu0 0
    %1129 = vmatpush1.bf16.msra.mxu0 0
    %1130 = vmatprep.subr.bf16.mxu0 0
    %1131 = vmatpush1.bf16.msra.mxu0 0
    %1132 = vmatprep.mubr.bf16.mxu0 0
    %1133 = vmatmul.mubr.bf16.gmra.mrb[0].mxu0 %v707
    %v1134 = vpop.f32.mrb[0].mxu0
    %v1135 = vadd.f32 0.0, %v1134
    %v1136 = vpop.f32.mrb[0].mxu0
    %v1137 = vpop.f32.mrb[0].mxu0
    %v1138 = vadd.f32 0.0, %v1137
    %v1139 = vpop.f32.mrb[0].mxu0
    %1140 = vdwg.mxu0
    %s1141 = scalar_lea.vmem [#allocation2], 576
    %v1142 = vld [vmem:[%s1141] sm:$0xf]
    %v1143 = vld [vmem:[%s1141 + $0x4] sm:$0xf]
    %v1144 = vld [vmem:[%s1141 + $0x8] sm:$0xf]
    %v1145 = vld [vmem:[%s1141 + $0xc] sm:$0xf]
    %v1146 = vld [vmem:[%s1141 + $0x10] sm:$0xf]
    %v1147 = vld [vmem:[%s1141 + $0x14] sm:$0xf]
    %v1148 = vld [vmem:[%s1141 + $0x18] sm:$0xf]
    %v1149 = vld [vmem:[%s1141 + $0x1c] sm:$0xf]
    %v1150 = vld [vmem:[%s1141 + $0x20] sm:$0xf]
    %v1151 = vld [vmem:[%s1141 + $0x24] sm:$0xf]
    %v1152 = vld [vmem:[%s1141 + $0x28] sm:$0xf]
    %v1153 = vld [vmem:[%s1141 + $0x2c] sm:$0xf]
    %v1154 = vld [vmem:[%s1141 + $0x30] sm:$0xf]
    %v1155 = vld [vmem:[%s1141 + $0x34] sm:$0xf]
    %v1156 = vld [vmem:[%s1141 + $0x38] sm:$0xf]
    %v1157 = vld [vmem:[%s1141 + $0x3c] sm:$0xf]
    %v1174 = vunpack.c.l.b16 %v1142
    %v1175 = vunpack.c.l.b16 %v1143
    %v1176 = vunpack.c.l.b16 %v1144
    %v1177 = vunpack.c.l.b16 %v1145
    %v1178 = vunpack.c.l.b16 %v1146
    %v1179 = vunpack.c.l.b16 %v1147
    %v1180 = vunpack.c.l.b16 %v1148
    %v1181 = vunpack.c.l.b16 %v1149
    %v1182 = vunpack.c.l.b16 %v1150
    %v1183 = vunpack.c.l.b16 %v1151
    %v1184 = vunpack.c.l.b16 %v1152
    %v1185 = vunpack.c.l.b16 %v1153
    %v1186 = vunpack.c.l.b16 %v1154
    %v1187 = vunpack.c.l.b16 %v1155
    %v1188 = vunpack.c.l.b16 %v1156
    %v1189 = vunpack.c.l.b16 %v1157
    %v1190 = vpack.c.b16 %v1175, %v1174
    %v1191 = vpack.c.b16 %v1177, %v1176
    %v1192 = vpack.c.b16 %v1179, %v1178
    %v1193 = vpack.c.b16 %v1181, %v1180
    %v1194 = vpack.c.b16 %v1183, %v1182
    %v1195 = vpack.c.b16 %v1185, %v1184
    %v1196 = vpack.c.b16 %v1187, %v1186
    %v1197 = vpack.c.b16 %v1189, %v1188
    %1206 = vmatprep.subr.bf16.mxu0 0
    %1207 = vmatpush1.bf16.msra.mxu0 %v1190
    %1208 = vmatprep.subr.bf16.mxu0 0
    %1209 = vmatpush1.bf16.msra.mxu0 %v1191
    %1210 = vmatprep.subr.bf16.mxu0 0
    %1211 = vmatpush1.bf16.msra.mxu0 %v1192
    %1212 = vmatprep.subr.bf16.mxu0 0
    %1213 = vmatpush1.bf16.msra.mxu0 %v1193
    %1214 = vmatprep.subr.bf16.mxu0 0
    %1215 = vmatpush1.bf16.msra.mxu0 %v1194
    %1216 = vmatprep.subr.bf16.mxu0 0
    %1217 = vmatpush1.bf16.msra.mxu0 %v1195
    %1218 = vmatprep.subr.bf16.mxu0 0
    %1219 = vmatpush1.bf16.msra.mxu0 %v1196
    %1220 = vmatprep.subr.bf16.mxu0 0
    %1221 = vmatpush1.bf16.msra.mxu0 %v1197
    %1222 = vmatprep.subr.bf16.mxu0 0
    %1223 = vmatpush1.bf16.msra.mxu0 0
    %1224 = vmatprep.subr.bf16.mxu0 0
    %1225 = vmatpush1.bf16.msra.mxu0 0
    %1226 = vmatprep.subr.bf16.mxu0 0
    %1227 = vmatpush1.bf16.msra.mxu0 0
    %1228 = vmatprep.subr.bf16.mxu0 0
    %1229 = vmatpush1.bf16.msra.mxu0 0
    %1230 = vmatprep.subr.bf16.mxu0 0
    %1231 = vmatpush1.bf16.msra.mxu0 0
    %1232 = vmatprep.subr.bf16.mxu0 0
    %1233 = vmatpush1.bf16.msra.mxu0 0
    %1234 = vmatprep.subr.bf16.mxu0 0
    %1235 = vmatpush1.bf16.msra.mxu0 0
    %1236 = vmatprep.subr.bf16.mxu0 0
    %1237 = vmatpush1.bf16.msra.mxu0 0
    %1238 = vmatprep.mubr.bf16.mxu0 0
    %1239 = vmatmul.mubr.bf16.gmra.mrb[0].mxu0 %v708
    %v1240 = vpop.f32.mrb[0].mxu0
    %v1241 = vadd.f32 0.0, %v1240
    %v1242 = vpop.f32.mrb[0].mxu0
    %v1243 = vpop.f32.mrb[0].mxu0
    %v1244 = vadd.f32 0.0, %v1243
    %v1245 = vpop.f32.mrb[0].mxu0
    %1246 = vmatprep.mubr.bf16.mxu0 0
    %1247 = vmatmul.mubr.bf16.gmra.mrb[0].mxu0 %v709
    %v1248 = vpop.f32.mrb[0].mxu0
    %v1249 = vadd.f32 0.0, %v1248
    %v1250 = vpop.f32.mrb[0].mxu0
    %v1251 = vpop.f32.mrb[0].mxu0
    %v1252 = vpop.f32.mrb[0].mxu0
    %1253 = vdwg.mxu0
    %v1254 = vpack.c.bf16 %v813, %v810
    %v1255 = vpack.c.bf16 %v919, %v916
    %v1256 = vpack.c.bf16 %v1025, %v1022
    %v1257 = vpack.c.bf16 %v1135, %v1030
    %v1258 = vpack.c.bf16 %v1241, %v1138
    %v1259 = vpack.c.bf16 %v1249, %v1244
    %s1260 = scalar_lea.vmem %s3, 40
    %v1261 = vld [vmem:[%s1260] sm:$0xff]
    %v1262 = vld [vmem:[%s1260 + $0x8] sm:$0xff]
    %v1263 = vld [vmem:[%s1260 + $0x10] sm:$0xff]
    %v1264 = vld [vmem:[%s1260 + $0x18] sm:$0xff]
    %v1265 = vld [vmem:[%s1260 + $0x20] sm:$0xff]
    %1266 = vmatprep.subr.bf16.mxu0 0
    %1267 = vmatpush1.bf16.msra.mxu0 %v1254
    %1268 = vmatprep.subr.bf16.mxu0 0
    %1269 = vmatpush1.bf16.msra.mxu0 %v1255
    %1270 = vmatprep.subr.bf16.mxu0 0
    %1271 = vmatpush1.bf16.msra.mxu0 %v1256
    %1272 = vmatprep.subr.bf16.mxu0 0
    %1273 = vmatpush1.bf16.msra.mxu0 %v1257
    %1274 = vmatprep.subr.bf16.mxu0 0
    %1275 = vmatpush1.bf16.msra.mxu0 %v1258
    %1276 = vmatprep.subr.bf16.mxu0 0
    %1277 = vmatpush1.bf16.msra.mxu0 %v1259
    %1278 = vmatprep.subr.bf16.mxu0 0
    %1279 = vmatpush1.bf16.msra.mxu0 %v594
    %1280 = vmatprep.subr.bf16.mxu0 0
    %1281 = vmatpush1.bf16.msra.mxu0 %v594
    %1282 = vmatprep.subr.bf16.mxu0 0
    %1283 = vmatpush1.bf16.msra.mxu0 0
    %1284 = vmatprep.subr.bf16.mxu0 0
    %1285 = vmatpush1.bf16.msra.mxu0 0
    %1286 = vmatprep.subr.bf16.mxu0 0
    %1287 = vmatpush1.bf16.msra.mxu0 0
    %1288 = vmatprep.subr.bf16.mxu0 0
    %1289 = vmatpush1.bf16.msra.mxu0 0
    %1290 = vmatprep.subr.bf16.mxu0 0
    %1291 = vmatpush1.bf16.msra.mxu0 0
    %1292 = vmatprep.subr.bf16.mxu0 0
    %1293 = vmatpush1.bf16.msra.mxu0 0
    %1294 = vmatprep.subr.bf16.mxu0 0
    %1295 = vmatpush1.bf16.msra.mxu0 0
    %1296 = vmatprep.subr.bf16.mxu0 0
    %1297 = vmatpush1.bf16.msra.mxu0 0
    %1298 = vmatprep.mubr.bf16.mxu0 0
    %1299 = vmatmul.mubr.bf16.gmra.mrb[0].mxu0 %v610
    %v1300 = vpop.f32.mrb[0].mxu0
    %v1301 = vadd.f32 %v1261, %v1300
    %v1302 = vpop.f32.mrb[0].mxu0
    %v1303 = vpop.f32.mrb[0].mxu0
    %v1304 = vadd.f32 %v1262, %v1303
    %v1305 = vpop.f32.mrb[0].mxu0
    %1306 = vmatprep.mubr.bf16.mxu0 0
    %1307 = vmatmul.mubr.bf16.gmra.mrb[0].mxu0 %v611
    %v1308 = vpop.f32.mrb[0].mxu0
    %v1309 = vadd.f32 %v1263, %v1308
    %v1310 = vpop.f32.mrb[0].mxu0
    %v1311 = vpop.f32.mrb[0].mxu0
    %v1312 = vadd.f32 %v1264, %v1311
    %v1313 = vpop.f32.mrb[0].mxu0
    %1314 = vmatprep.mubr.bf16.mxu0 0
    %1315 = vmatmul.mubr.bf16.gmra.mrb[0].mxu0 %v612
    %v1316 = vpop.f32.mrb[0].mxu0
    %v1317 = vadd.f32 %v1265, %v1316
    %v1318 = vpop.f32.mrb[0].mxu0
    %v1319 = vpop.f32.mrb[0].mxu0
    %v1320 = vpop.f32.mrb[0].mxu0
    %1321 = vdwg.mxu0
    %v1322 = vmax.f32 %v1301, 0.0
    %v1323 = vmax.f32 %v1304, 0.0
    %v1324 = vmax.f32 %v1309, 0.0
    %v1325 = vmax.f32 %v1312, 0.0
    %v1326 = vmax.f32 %v1317, 0.0
    %v1327 = vmul.f32 %v1322, %v1322
    %v1328 = vmul.f32 %v1323, %v1323
    %v1329 = vmul.f32 %v1324, %v1324
    %v1330 = vmul.f32 %v1325, %v1325
    %v1331 = vmul.f32 %v1326, %v1326
    %1332 = vadd.xlane.f32.xlu0 %v1327
    %v1333 = vpop.xlane.xlu0 %1332
    %1334 = vadd.xlane.f32.xlu0 %v1328
    %v1335 = vpop.xlane.xlu0 %1334
    %1336 = vadd.xlane.f32.xlu0 %v1329
    %v1337 = vpop.xlane.xlu0 %1336
    %1338 = vadd.xlane.f32.xlu0 %v1330
    %v1339 = vpop.xlane.xlu0 %1338
    %1340 = vadd.xlane.f32.xlu0 %v1331
    %v1341 = vpop.xlane.xlu0 %1340
    %v1342 = vmax.f32 %v1333, 1e-24
    %v1343 = vmax.f32 %v1335, 1e-24
    %v1344 = vmax.f32 %v1337, 1e-24
    %v1345 = vmax.f32 %v1339, 1e-24
    %v1346 = vmax.f32 %v1341, 1e-24
    %v1347 = vrsqrt.pop %v1342
    %v1348 = vrsqrt.pop %v1343
    %v1349 = vrsqrt.pop %v1344
    %v1350 = vrsqrt.pop %v1345
    %v1351 = vrsqrt.pop %v1346
    %v1352 = vmul.f32 %v1322, %v1347
    %v1353 = vmul.f32 %v1323, %v1348
    %v1354 = vmul.f32 %v1324, %v1349
    %v1355 = vmul.f32 %v1325, %v1350
    %v1356 = vmul.f32 %v1326, %v1351
    %v1357 = vmul.f32 %v1352, %v1352
    %v1358 = vmul.f32 %v1353, %v1353
    %v1359 = vmul.f32 %v1354, %v1354
    %v1360 = vmul.f32 %v1355, %v1355
    %v1361 = vmul.f32 %v1356, %v1356
    %1362 = vadd.xlane.f32.xlu0 %v1357
    %v1363 = vpop.xlane.xlu0 %1362
    %1364 = vadd.xlane.f32.xlu0 %v1358
    %v1365 = vpop.xlane.xlu0 %1364
    %1366 = vadd.xlane.f32.xlu0 %v1359
    %v1367 = vpop.xlane.xlu0 %1366
    %1368 = vadd.xlane.f32.xlu0 %v1360
    %v1369 = vpop.xlane.xlu0 %1368
    %1370 = vadd.xlane.f32.xlu0 %v1361
    %v1371 = vpop.xlane.xlu0 %1370
    %v1372 = vmax.f32 %v1363, 1e-24
    %v1373 = vmax.f32 %v1365, 1e-24
    %v1374 = vmax.f32 %v1367, 1e-24
    %v1375 = vmax.f32 %v1369, 1e-24
    %v1376 = vmax.f32 %v1371, 1e-24
    %v1377 = vrsqrt.pop %v1372
    %v1378 = vrsqrt.pop %v1373
    %v1379 = vrsqrt.pop %v1374
    %v1380 = vrsqrt.pop %v1375
    %v1381 = vrsqrt.pop %v1376
    %v1382 = vmul.f32 %v1352, %v1377
    %v1383 = vmul.f32 %v1353, %v1378
    %v1384 = vmul.f32 %v1354, %v1379
    %v1385 = vmul.f32 %v1355, %v1380
    %v1386 = vmul.f32 %v1356, %v1381
    %1387 = vst [vmem:[%s4] sm:$0xff] %v1382
    %1388 = vst [vmem:[%s4 + $0x8] sm:$0xff] %v1383
    %1389 = vst [vmem:[%s4 + $0x10] sm:$0xff] %v1384
    %1390 = vst [vmem:[%s4 + $0x18] sm:$0xff] %v1385
    %1391 = vst [vmem:[%s4 + $0x20] sm:$0xff] %v1386
    // Predicated region
    $region22: #{forward.1} parent=1 // pred_check
      _
    $region23: #{forward.1} parent=1 // pred_check_branch
      %1393 = sbr.rel (0) target = $region25
    $region24: #{forward.1} parent=1 // pred_region
      _
    $region25: #{forward.1} parent=1 // pred_fallthru
      _
    // Predicated region
    $region26: #{forward.1} parent=1 // pred_check
      _
    $region27: #{forward.1} parent=1 // pred_check_branch
      %1395 = sbr.rel (0) target = $region29
    $region28: #{forward.1} parent=1 // pred_region
      _
    $region29: #{forward.1} parent=1 // pred_fallthru
      _
    %1396 = vsyncpa [#allocation3], 1

</llo_original>
